<compile_context>
chip_gen: v6e
topology: v6e:2x2x1
jax: 0.10.0
libtpu: 0.0.40
codegen_flags: <defaults>
</compile_context>

<pallas_src>
import functools

import jax
import jax.numpy as jnp
from jax import image as jax_image
from jax.experimental import pallas as pl
from jax.experimental.pallas import tpu as pltpu


def _round_up(x, m):
    return (x + m - 1) // m * m


def _largest_divisor_leq(n, cap):
    for d in range(min(n, cap), 0, -1):
        if n % d == 0:
            return d
    return 1


def extract_patches(x, patch_size):
    """(B, C, T, H, W) -> (B, T, N, C*P*P) im2col patches (same (C, P, P)
    ordering as the ViT patch-embedding conv)."""
    B, C, T, H, W = x.shape
    P = patch_size
    nph, npw = H // P, W // P
    x = jnp.transpose(x, (0, 2, 1, 3, 4))            # (B, T, C, H, W)
    x = x.reshape(B, T, C, nph, P, npw, P)
    x = jnp.transpose(x, (0, 1, 3, 5, 2, 4, 6))      # (B, T, nph, npw, C, P, P)
    return x.reshape(B, T, nph * npw, C * P * P)


# ----------------------------------------------------------------------------
# Fused pool-path kernel: patch-embed + GELU + feature proj over T_BLK frames,
# temporal max/avg reduction into a VMEM accumulator, spatial avg-pool on the
# final temporal block.  grid = (B, T // T_BLK), second axis is the reduction.
# ----------------------------------------------------------------------------
def _vit_pool_kernel(patches_ref, w_pe_ref, b_pe_ref, w_fp_ref, b_fp_ref,
                     out_ref, acc_ref, *, pool_type, inv_T):
    tb = pl.program_id(1)

    @pl.when(tb == 0)
    def _():
        if pool_type == "maxpool":
            acc_ref[...] = jnp.full(acc_ref.shape, -jnp.inf, acc_ref.dtype)
        else:
            acc_ref[...] = jnp.zeros(acc_ref.shape, acc_ref.dtype)

    T_BLK, N, K = patches_ref.shape
    FD = acc_ref.shape[-1]

    patches = patches_ref[...].reshape(T_BLK * N, K)             # bf16, M = T_BLK*N
    tok = jnp.dot(patches, w_pe_ref[...],
                  preferred_element_type=jnp.float32)            # (M, HID) f32
    tok = jax.nn.gelu(tok + b_pe_ref[...], approximate=True)
    feats = jnp.dot(tok.astype(jnp.bfloat16), w_fp_ref[...],
                    preferred_element_type=jnp.float32)          # (M, FD) f32
    feats = (feats + b_fp_ref[...]).reshape(T_BLK, N, FD)

    if pool_type == "maxpool":
        acc_ref[...] = jnp.maximum(acc_ref[...], jnp.max(feats, axis=0))
    else:
        acc_ref[...] = acc_ref[...] + jnp.sum(feats, axis=0)

    @pl.when(tb == pl.num_programs(1) - 1)
    def _():
        pooled = acc_ref[...]
        if pool_type == "avgpool":
            pooled = pooled * inv_T
        # adaptive_avg_pool2d(., 1): mean over all N patch positions.
        out_ref[...] = jnp.mean(pooled, axis=0, keepdims=True)   # (1, FD)


# ----------------------------------------------------------------------------
# Per-frame feature kernel (pool=False path): patch-embed + GELU + feature
# proj for T_BLK frames per grid step; bf16 output (halves store traffic).
# ----------------------------------------------------------------------------
def _vit_feature_kernel(patches_ref, w_pe_ref, b_pe_ref, w_fp_ref, b_fp_ref,
                        o_ref):
    T_BLK, N, K = patches_ref.shape
    FD = o_ref.shape[-1]
    patches = patches_ref[...].reshape(T_BLK * N, K)
    tok = jnp.dot(patches, w_pe_ref[...], preferred_element_type=jnp.float32)
    tok = jax.nn.gelu(tok + b_pe_ref[...], approximate=True)
    feats = jnp.dot(tok.astype(jnp.bfloat16), w_fp_ref[...],
                    preferred_element_type=jnp.float32) + b_fp_ref[...]
    o_ref[...] = feats.reshape(T_BLK, N, FD).astype(o_ref.dtype)


# ----------------------------------------------------------------------------
# Vit wrapper (plain-JAX glue around the Pallas kernels)
# ----------------------------------------------------------------------------
class VitPallas:
    def __init__(self, key, in_ch=3, patch_size=16, feature_dim=32,
                 frame_size=(224, 224), pool_type="maxpool", hidden_size=128,
                 t_block=8):
        assert pool_type in ("maxpool", "avgpool")
        assert frame_size[0] % patch_size == 0 and frame_size[1] % patch_size == 0
        self.patch_size = patch_size
        self.frame_size = frame_size
        self.pool_type = pool_type
        self.feature_dim = feature_dim
        self.hidden_size = hidden_size
        self.t_block = t_block

        K = in_ch * patch_size * patch_size
        k1, k2, k3, k4, k5, k6 = jax.random.split(key, 6)
        # stand-in ViT patch embedding (external pretrained backbone — see TODO)
        self.w_pe = 0.03 * jax.random.normal(k1, (K, hidden_size), jnp.float32)
        self.b_pe = 0.02 * jax.random.normal(k2, (hidden_size,), jnp.float32)
        # self.feature_projector = nn.Linear(hidden_size, feature_dim)
        self.w_fp = 0.05 * jax.random.normal(k3, (hidden_size, feature_dim), jnp.float32)
        self.b_fp = 0.05 * jax.random.normal(k4, (feature_dim,), jnp.float32)
        # self.output_projector = nn.Linear(feature_dim, feature_dim)
        # (applied in plain JAX in forward(); hoisted out of the kernel)
        self.w_op = 0.10 * jax.random.normal(k5, (feature_dim, feature_dim), jnp.float32)
        self.b_op = 0.05 * jax.random.normal(k6, (feature_dim,), jnp.float32)

        # Kernel-side params: bf16 matmul inputs; feature dim zero-padded to a
        # lane-dense multiple of 128 (sliced back to feature_dim in forward()).
        FD = _round_up(feature_dim, 128)
        self.fd_pad = FD
        pad = FD - feature_dim
        self._w_pe_k = self.w_pe.astype(jnp.bfloat16)
        self._b_pe_k = self.b_pe.reshape(1, hidden_size)
        self._w_fp_k = jnp.pad(self.w_fp, ((0, 0), (0, pad))).astype(jnp.bfloat16)
        self._b_fp_k = jnp.pad(self.b_fp, (0, pad)).reshape(1, FD)

    def forward(self, x, pool=True):
        B, C, T, H, W = x.shape
        assert (H, W) == self.frame_size, \
            "Input frames must match the initialized frame size"
        P = self.patch_size
        nph, npw = H // P, W // P
        N = nph * npw
        K = C * P * P
        HID = self.hidden_size
        FD = self.fd_pad
        T_BLK = _largest_divisor_leq(T, self.t_block)
        n_tb = T // T_BLK

        # im2col in bf16 (cast BEFORE the shuffle: halves its HBM read+write)
        patches = extract_patches(x.astype(jnp.bfloat16), P)     # (B, T, N, K) bf16

        patch_spec = pl.BlockSpec((None, T_BLK, N, K), lambda b, tb: (b, tb, 0, 0))
        w_specs = [
            pl.BlockSpec((K, HID), lambda b, tb: (0, 0)),
            pl.BlockSpec((1, HID), lambda b, tb: (0, 0)),
            pl.BlockSpec((HID, FD), lambda b, tb: (0, 0)),
            pl.BlockSpec((1, FD), lambda b, tb: (0, 0)),
        ]

        if pool:
            kernel = functools.partial(_vit_pool_kernel,
                                       pool_type=self.pool_type, inv_T=1.0 / T)
            pooled = pl.pallas_call(
                kernel,
                out_shape=jax.ShapeDtypeStruct((B, 1, FD), jnp.float32),
                grid=(B, n_tb),
                in_specs=[patch_spec] + w_specs,
                out_specs=pl.BlockSpec((None, 1, FD), lambda b, tb: (b, 0, 0)),
                scratch_shapes=[pltpu.VMEM((N, FD), jnp.float32)],
                compiler_params=pltpu.CompilerParams(
                    dimension_semantics=("parallel", "arbitrary")),
            )(patches, self._w_pe_k, self._b_pe_k, self._w_fp_k, self._b_fp_k)
            vec = pooled.reshape(B, FD)[:, :self.feature_dim]
            # output_projector hoisted out of the kernel (M=1 f32 matmul is a
            # poor MXU shape); trivial (B, 32) @ (32, 32) in plain JAX.
            return jnp.dot(vec, self.w_op,
                           precision=jax.lax.Precision.HIGHEST) + self.b_op

        # pool=False: per-frame feature maps (bf16), then trilinear upsample.
        feats = pl.pallas_call(
            _vit_feature_kernel,
            out_shape=jax.ShapeDtypeStruct((B, T, N, FD), jnp.bfloat16),
            grid=(B, n_tb),
            in_specs=[patch_spec] + w_specs,
            out_specs=pl.BlockSpec((None, T_BLK, N, FD),
                                   lambda b, tb: (b, tb, 0, 0)),
            compiler_params=pltpu.CompilerParams(
                dimension_semantics=("parallel", "parallel")),
        )(patches, self._w_pe_k, self._b_pe_k, self._w_fp_k, self._b_fp_k)
        feats = feats[..., :self.feature_dim].astype(jnp.float32)
        feats = feats.reshape(B, T, nph, npw, self.feature_dim)
        feats = jnp.transpose(feats, (0, 4, 1, 2, 3))            # (B, feat, T, nph, npw)
        # TODO(synk): F.interpolate(mode='trilinear', align_corners=False) done
        # with jax.image.resize (same half-pixel convention) in plain JAX, not
        # as a Pallas kernel.
        return jax_image.resize(feats, (B, self.feature_dim, T, H, W),
                                method="linear")


# ----------------------------------------------------------------------------
# Pure-JAX f32 reference for verification
# ----------------------------------------------------------------------------
def _ref_forward(x, model, pool=True):
    B, C, T, H, W = x.shape
    P = model.patch_size
    nph, npw = H // P, W // P
    fd = model.feature_dim
    hp = jax.lax.Precision.HIGHEST
    patches = extract_patches(x, P)                              # f32
    tok = jnp.einsum("btnk,kh->btnh", patches, model.w_pe, precision=hp) + model.b_pe
    tok = jax.nn.gelu(tok, approximate=True)
    feats = jnp.einsum("btnh,hf->btnf", tok, model.w_fp, precision=hp) + model.b_fp
    feats = feats.reshape(B, T, nph, npw, fd)
    if pool:
        if model.pool_type == "maxpool":
            pooled = jnp.max(feats, axis=1)
        else:
            pooled = jnp.mean(feats, axis=1)
        vec = jnp.mean(pooled, axis=(1, 2))                      # (B, fd)
        return jnp.dot(vec, model.w_op, precision=hp) + model.b_op
    dense = jnp.transpose(feats, (0, 4, 1, 2, 3))
    return jax_image.resize(dense, (B, fd, T, H, W), method="linear")


if __name__ == "__main__":
    key = jax.random.PRNGKey(0)
    k_x, k_p = jax.random.split(key)

    B, C, T, H, W = 2, 3, 16, 64, 64
    x = jax.random.normal(k_x, (B, C, T, H, W), jnp.float32)

    model = VitPallas(k_p, in_ch=C, patch_size=16, feature_dim=32,
                      frame_size=(H, W), pool_type="maxpool", t_block=8)

    # pool=True, maxpool (2 temporal blocks -> exercises the accumulator path)
    out = jax.block_until_ready(model.forward(x, pool=True))
    assert out.shape == (B, 32), out.shape
    assert bool(jnp.all(jnp.isfinite(out)))
    ref = jax.block_until_ready(_ref_forward(x, model, pool=True))
    err = float(jnp.max(jnp.abs(out - ref)))
    assert jnp.allclose(out, ref, atol=2e-2, rtol=2e-2), err

    # pool=True, avgpool (same weights, different temporal reduction)
    model.pool_type = "avgpool"
    out_avg = jax.block_until_ready(model.forward(x, pool=True))
    ref_avg = jax.block_until_ready(_ref_forward(x, model, pool=True))
    err_avg = float(jnp.max(jnp.abs(out_avg - ref_avg)))
    assert jnp.allclose(out_avg, ref_avg, atol=2e-2, rtol=2e-2), err_avg
    model.pool_type = "maxpool"

    # pool=False: per-frame feature maps + trilinear upsample
    dense = jax.block_until_ready(model.forward(x, pool=False))
    assert dense.shape == (B, 32, T, H, W), dense.shape
    assert bool(jnp.all(jnp.isfinite(dense)))
    ref_dense = jax.block_until_ready(_ref_forward(x, model, pool=False))
    err_d = float(jnp.max(jnp.abs(dense - ref_dense)))
    assert jnp.allclose(dense, ref_dense, atol=6e-2, rtol=6e-2), err_d

    print("KERNEL_OK")
</pallas_src>

<mosaic_0001>
module attributes {stable_mosaic.version = 11 : i64} {
  func.func @_vit_pool_kernel(%arg0: i32, %arg1: i32, %arg2: memref<1x8x16x768xbf16, #tpu.memory_space<vmem>>, %arg3: memref<768x128xbf16, #tpu.memory_space<vmem>>, %arg4: memref<1x128xf32, #tpu.memory_space<vmem>>, %arg5: memref<128x128xbf16, #tpu.memory_space<vmem>>, %arg6: memref<1x128xf32, #tpu.memory_space<vmem>>, %arg7: memref<1x1x128xf32, #tpu.memory_space<vmem>>, %arg8: memref<16x128xf32, #tpu.memory_space<vmem>>) attributes {dimension_semantics = [#tpu.dimension_semantics<parallel>, #tpu.dimension_semantics<arbitrary>], iteration_bounds = array<i64: 2, 2>, scalar_prefetch = 0 : i64, scratch_operands = 1 : i64, tpu.core_type = #tpu.core_type<tc>, window_params = [{transform_indices = @transform_0, window_bounds = array<i64: 1, 8, 16, 768>}, {pipeline_mode = #tpu.pipeline_mode<synchronous>, transform_indices = @transform_1, window_bounds = array<i64: 768, 128>}, {pipeline_mode = #tpu.pipeline_mode<synchronous>, transform_indices = @transform_2, window_bounds = array<i64: 1, 128>}, {pipeline_mode = #tpu.pipeline_mode<synchronous>, transform_indices = @transform_3, window_bounds = array<i64: 128, 128>}, {pipeline_mode = #tpu.pipeline_mode<synchronous>, transform_indices = @transform_4, window_bounds = array<i64: 1, 128>}, {transform_indices = @transform_5, window_bounds = array<i64: 1, 1, 128>}]} {
    %c0_i32 = arith.constant 0 : i32
    %0 = arith.cmpi eq, %arg1, %c0_i32 : i32
    %1 = arith.extui %0 : i1 to i32
    %c0_i32_0 = arith.constant 0 : i32
    %2 = arith.cmpi ne, %1, %c0_i32_0 : i32
    scf.if %2 {
      %cst_23 = arith.constant 0xFF800000 : f32
      %38 = vector.broadcast %cst_23 : f32 to vector<16x128xf32>
      %c0_24 = arith.constant 0 : index
      %c0_25 = arith.constant 0 : index
      %39 = vector.load %arg8[%c0_24, %c0_25] : memref<16x128xf32, #tpu.memory_space<vmem>>, vector<16x128xf32>
      tpu.vector_store %arg8[%c0_24, %c0_25], %38 {strides = array<i32>} : memref<16x128xf32, #tpu.memory_space<vmem>>, vector<16x128xf32>,
    } else {
    }
    %c0 = arith.constant 0 : index
    %c0_1 = arith.constant 0 : index
    %c0_2 = arith.constant 0 : index
    %c0_3 = arith.constant 0 : index
    %3 = vector.load %arg2[%c0, %c0_1, %c0_2, %c0_3] : memref<1x8x16x768xbf16, #tpu.memory_space<vmem>>, vector<1x8x16x768xbf16>
    %4 = vector.shape_cast %3 : vector<1x8x16x768xbf16> to vector<8x16x768xbf16>
    %5 = vector.shape_cast %4 : vector<8x16x768xbf16> to vector<128x768xbf16>
    %c0_4 = arith.constant 0 : index
    %c0_5 = arith.constant 0 : index
    %6 = vector.load %arg3[%c0_4, %c0_5] : memref<768x128xbf16, #tpu.memory_space<vmem>>, vector<768x128xbf16>
    %cst = arith.constant dense<0.000000e+00> : vector<128x128xf32>
    %7 = tpu.matmul %5, %6, %cst {dimension_numbers = #tpu.dot_dimension_numbers<[1], [0], [0], [1], [0, 0, 1, 1], [], []>} : vector<128x768xbf16>, vector<768x128xbf16>, vector<128x128xf32> -> vector<128x128xf32>
    %c0_6 = arith.constant 0 : index
    %c0_7 = arith.constant 0 : index
    %8 = vector.load %arg4[%c0_6, %c0_7] : memref<1x128xf32, #tpu.memory_space<vmem>>, vector<1x128xf32>
    %9 = vector.broadcast %8 : vector<1x128xf32> to vector<128x128xf32>
    %10 = arith.addf %7, %9 : vector<128x128xf32>
    %11 = arith.mulf %10, %10 : vector<128x128xf32>
    %12 = arith.mulf %10, %11 : vector<128x128xf32>
    %cst_8 = arith.constant 4.471500e-02 : f32
    %13 = vector.broadcast %cst_8 : f32 to vector<128x128xf32>
    %14 = arith.mulf %13, %12 : vector<128x128xf32>
    %15 = arith.addf %10, %14 : vector<128x128xf32>
    %cst_9 = arith.constant 0.797884583 : f32
    %16 = vector.broadcast %cst_9 : f32 to vector<128x128xf32>
    %17 = arith.mulf %16, %15 : vector<128x128xf32>
    %18 = math.tanh %17 : vector<128x128xf32>
    %cst_10 = arith.constant 1.000000e+00 : f32
    %19 = vector.broadcast %cst_10 : f32 to vector<128x128xf32>
    %20 = arith.addf %19, %18 : vector<128x128xf32>
    %cst_11 = arith.constant 5.000000e-01 : f32
    %21 = vector.broadcast %cst_11 : f32 to vector<128x128xf32>
    %22 = arith.mulf %21, %20 : vector<128x128xf32>
    %23 = arith.mulf %10, %22 : vector<128x128xf32>
    %24 = arith.truncf %23 : vector<128x128xf32> to vector<128x128xbf16>
    %c0_12 = arith.constant 0 : index
    %c0_13 = arith.constant 0 : index
    %25 = vector.load %arg5[%c0_12, %c0_13] : memref<128x128xbf16, #tpu.memory_space<vmem>>, vector<128x128xbf16>
    %cst_14 = arith.constant dense<0.000000e+00> : vector<128x128xf32>
    %26 = tpu.matmul %24, %25, %cst_14 {dimension_numbers = #tpu.dot_dimension_numbers<[1], [0], [0], [1], [0, 0, 1, 1], [], []>} : vector<128x128xbf16>, vector<128x128xbf16>, vector<128x128xf32> -> vector<128x128xf32>
    %c0_15 = arith.constant 0 : index
    %c0_16 = arith.constant 0 : index
    %27 = vector.load %arg6[%c0_15, %c0_16] : memref<1x128xf32, #tpu.memory_space<vmem>>, vector<1x128xf32>
    %28 = vector.broadcast %27 : vector<1x128xf32> to vector<128x128xf32>
    %29 = arith.addf %26, %28 : vector<128x128xf32>
    %30 = vector.shape_cast %29 : vector<128x128xf32> to vector<8x16x128xf32>
    %c0_17 = arith.constant 0 : index
    %c0_18 = arith.constant 0 : index
    %31 = vector.load %arg8[%c0_17, %c0_18] : memref<16x128xf32, #tpu.memory_space<vmem>>, vector<16x128xf32>
    %cst_19 = arith.constant dense<0xFF800000> : vector<16x128xf32>
    %32 = vector.multi_reduction <maximumf>, %30, %cst_19 [0] : vector<8x16x128xf32> to vector<16x128xf32>
    %33 = arith.maximumf %31, %32 : vector<16x128xf32>
    %c0_20 = arith.constant 0 : index
    %c0_21 = arith.constant 0 : index
    %34 = vector.load %arg8[%c0_20, %c0_21] : memref<16x128xf32, #tpu.memory_space<vmem>>, vector<16x128xf32>
    tpu.vector_store %arg8[%c0_20, %c0_21], %33 {strides = array<i32>} : memref<16x128xf32, #tpu.memory_space<vmem>>, vector<16x128xf32>,
    %c1_i32 = arith.constant 1 : i32
    %35 = arith.cmpi eq, %arg1, %c1_i32 : i32
    %36 = arith.extui %35 : i1 to i32
    %c0_i32_22 = arith.constant 0 : i32
    %37 = arith.cmpi ne, %36, %c0_i32_22 : i32
    scf.if %37 {
      %c0_23 = arith.constant 0 : index
      %c0_24 = arith.constant 0 : index
      %38 = vector.load %arg8[%c0_23, %c0_24] : memref<16x128xf32, #tpu.memory_space<vmem>>, vector<16x128xf32>
      %cst_25 = arith.constant dense<0.000000e+00> : vector<128xf32>
      %39 = vector.multi_reduction <add>, %38, %cst_25 [0] : vector<16x128xf32> to vector<128xf32>
      %40 = vector.shape_cast %39 : vector<128xf32> to vector<1x128xf32>
      %cst_26 = arith.constant 1.600000e+01 : f32
      %41 = vector.broadcast %cst_26 : f32 to vector<1x128xf32>
      %42 = arith.divf %40, %41 : vector<1x128xf32>
      %c0_27 = arith.constant 0 : index
      %c0_28 = arith.constant 0 : index
      %c0_29 = arith.constant 0 : index
      %43 = vector.load %arg7[%c0_27, %c0_28, %c0_29] : memref<1x1x128xf32, #tpu.memory_space<vmem>>, vector<1x1x128xf32>
      %44 = vector.shape_cast %43 : vector<1x1x128xf32> to vector<1x128xf32>
      %45 = vector.shape_cast %42 : vector<1x128xf32> to vector<1x1x128xf32>
      tpu.vector_store %arg7[%c0_27, %c0_28, %c0_29], %45 {strides = array<i32>} : memref<1x1x128xf32, #tpu.memory_space<vmem>>, vector<1x1x128xf32>,
    } else {
    }
    return
  }
  func.func @transform_0(%arg0: i32, %arg1: i32) -> (i32, i32, i32, i32) {
    %c0_i32 = arith.constant 0 : i32
    %c0_i32_0 = arith.constant 0 : i32
    %c0_i32_1 = arith.constant 0 : i32
    return %arg0, %arg1, %c0_i32, %c0_i32_0 : i32, i32, i32, i32
  }
  func.func @transform_1(%arg0: i32, %arg1: i32) -> (i32, i32) {
    %c0_i32 = arith.constant 0 : i32
    %c0_i32_0 = arith.constant 0 : i32
    %c0_i32_1 = arith.constant 0 : i32
    return %c0_i32, %c0_i32_0 : i32, i32
  }
  func.func @transform_2(%arg0: i32, %arg1: i32) -> (i32, i32) {
    %c0_i32 = arith.constant 0 : i32
    %c0_i32_0 = arith.constant 0 : i32
    %c0_i32_1 = arith.constant 0 : i32
    return %c0_i32, %c0_i32_0 : i32, i32
  }
  func.func @transform_3(%arg0: i32, %arg1: i32) -> (i32, i32) {
    %c0_i32 = arith.constant 0 : i32
    %c0_i32_0 = arith.constant 0 : i32
    %c0_i32_1 = arith.constant 0 : i32
    return %c0_i32, %c0_i32_0 : i32, i32
  }
  func.func @transform_4(%arg0: i32, %arg1: i32) -> (i32, i32) {
    %c0_i32 = arith.constant 0 : i32
    %c0_i32_0 = arith.constant 0 : i32
    %c0_i32_1 = arith.constant 0 : i32
    return %c0_i32, %c0_i32_0 : i32, i32
  }
  func.func @transform_5(%arg0: i32, %arg1: i32) -> (i32, i32, i32) {
    %c0_i32 = arith.constant 0 : i32
    %c0_i32_0 = arith.constant 0 : i32
    %c0_i32_1 = arith.constant 0 : i32
    return %arg0, %c0_i32, %c0_i32_0 : i32, i32, i32
  }
}

</mosaic_0001>

<llo_original>
// kernel: tpu_custom_call.1
$region0: #{tpu_custom_call.1}
  #allocation0 [shape = 'u32[]', space=smem, size = 0x4, offset = 0x4, fixed_abs, tag = 'smem constant byte address 0x4 - core index']
  #allocation1 [shape = 'u32[144,128]{1,0:T(1,128)}', space=vmem, size = 0x12000, scoped, tag = 'internal scratch']
  #allocation2 [shape = 'f32[16,128]{1,0:T(8,128)}', space=vmem, size = 0x2000, scoped, tag = 'scratch operand']
  %s0 = inlined_call_operand.hbm [shape: bf16[2,16,16,768], index: 0, kind: input, shape index: {}]
  %s1 = inlined_call_operand.hbm [shape: bf16[768,128], index: 1, kind: input, shape index: {}]
  %s2 = inlined_call_operand.vmem [shape: f32[1,128], index: 2, kind: input, shape index: {}]
  %s3 = inlined_call_operand.hbm [shape: bf16[128,128], index: 3, kind: input, shape index: {}]
  %s4 = inlined_call_operand.vmem [shape: f32[1,128], index: 4, kind: input, shape index: {}]
  %s5 = inlined_call_operand.hbm [shape: f32[2,1,128], index: 5, kind: output, shape index: {}]
  %s6 = sld [smem:[#allocation0]]
  $region73: #{tpu_custom_call.1} parent=0
    _
  %s8 = ssub.s32 1, %s6
  %s9 = scalar_select 0, %s8, %s6
  $region1: #{tpu_custom_call.1} parent=0
    #allocation3 [shape = 'u8[393216]{0}', space=vmem, size = 0x60000, scoped, tag = 'input window, operand 0']
    #allocation4 [shape = 's32[2]{0}', space=sflag, size = 0x8, scoped, tag = 'scoped memory for tpu_custom_call.1']
    #allocation5 [shape = 's32[2]{0}', space=sflag, size = 0x8, scoped, tag = 'scoped memory for tpu_custom_call.1']
    #allocation6 [shape = 'u8[196608]{0}', space=vmem, size = 0x30000, scoped, tag = 'input window, operand 1, single buffered']
    #allocation7 [shape = 's32[1]{0}', space=sflag, size = 0x4, scoped, tag = 'scoped memory for tpu_custom_call.1']
    #allocation8 [shape = 'u8[32768]{0}', space=vmem, size = 0x8000, scoped, tag = 'input window, operand 3, single buffered']
    #allocation9 [shape = 'u8[1024]{0}', space=vmem, size = 0x400, scoped, tag = 'output window, operand 0']
    %10 = vsyncpa [#allocation4], 0
    %s11 = scalar_lea.sflag [#allocation4], 1
    %12 = vsyncpa %s11, 0
    %13 = vsyncpa [#allocation7], 0
    %14 = vsyncpa [#allocation5], 0
    %s15 = scalar_lea.sflag [#allocation5], 1
    %16 = vsyncpa %s15, 0
    loop: start=0, step=1, limit=6
    $region2: #{tpu_custom_call.1} parent=1 // loop_pre_header
      _
    $region3: #{tpu_custom_call.1} parent=1 // loop_header
      %s18 = sphi 0, %s22
      %p19 = scmp.ge.s32.totalorder %s18, 6
      %s25 = sphi 0, %s37
      %s26 = sphi 0, %s33
      %s27 = sphi 0, %s25
      %s28 = sphi 0, %s26
      %s29 = sphi 0, %s27
      %s30 = sphi 0, %s28
      %s42 = sphi 0, %s44
      %s45 = sphi 0, %s42
      %s46 = sphi 0, %s45
      %s62 = sphi 0, %s46
      %s66 = sphi 0, %s66
      %s68 = sphi 0, %s66
      %s69 = sphi 0, %s68
      %s83 = sphi 0, %s69
      %s87 = sphi 0, %s87
      %s89 = sphi 0, %s87
      %s90 = sphi 0, %s89
      %s104 = sphi 0, %s90
      %s108 = sphi 0, %s108
      %s110 = sphi 0, %s108
      %s111 = sphi 0, %s110
      %s125 = sphi 0, %s111
      %s129 = sphi 0, %s129
      %s131 = sphi 0, %s129
      %s132 = sphi 0, %s131
      %s146 = sphi 0, %s132
      %s152 = sphi 0, %s154
      %s155 = sphi 0, %s152
      %s156 = sphi 0, %s155
      %s172 = sphi 0, %s156
    $region4: #{tpu_custom_call.1} parent=1 // loop_header_branch
      %21 = sbr.rel (%p19) target = $region8
    $region5: #{tpu_custom_call.1} parent=1 // loop_body
      %s23 = ssub.s32 %s18, 1
      %s24 = ssub.s32 %s18, 2
      %s31 = sadd.s32 1, %s26
      %p32 = scmp.ge.s32.totalorder %s31, 2
      %s33 = scalar_select %p32, 0, %s31
      %s34 = sadd.s32 1, %s25
      %s35 = scalar_select %p32, %s34, %s25
      %p36 = scmp.ge.s32.totalorder %s35, 2
      %s37 = scalar_select %p36, 0, %s35
      %s38 = ssub.s32 %s25, %s37
      %s39 = ssub.s32 %s26, %s33
      %s40 = sor.u32 %s38, %s39
      %p41 = scmp.eq.s32.totalorder %s40, 0
      %s43 = sadd.s32 %s42, 1
      %s44 = scalar_select %p41, %s42, %s43
      %p47 = pneg %p41
      %p48 = scmp.eq.s32.totalorder %s18, 3
      %p49 = por %p47, %p48
      %p50 = scmp.ne.s32.totalorder %s42, %s45
      %p51 = scmp.eq.s32.totalorder %s18, 0
      %p52 = por %p50, %p51
      %p53 = scmp.ne.s32.totalorder %s42, %s45
      %p54 = scmp.eq.s32.totalorder %s23, 3
      %p55 = por %p53, %p54
      %p56 = scmp.ne.s32.totalorder %s45, %s46
      %p57 = scmp.eq.s32.totalorder %s23, 0
      %p58 = por %p56, %p57
      %p59 = scmp.ne.s32.totalorder %s45, %s46
      %p60 = scmp.eq.s32.totalorder %s24, 3
      %p61 = por %p59, %p60
      %p63 = scmp.ne.s32.totalorder %s46, %s62
      %p64 = scmp.eq.s32.totalorder %s24, 0
      %p65 = por %p63, %p64
      %s67 = sadd.s32 %s66, 1
      %p70 = scmp.eq.s32.totalorder %s18, 3
      %p71 = scmp.ne.s32.totalorder %s66, %s68
      %p72 = scmp.eq.s32.totalorder %s18, 0
      %p73 = por %p71, %p72
      %p74 = scmp.ne.s32.totalorder %s66, %s68
      %p75 = scmp.eq.s32.totalorder %s23, 3
      %p76 = por %p74, %p75
      %p77 = scmp.ne.s32.totalorder %s68, %s69
      %p78 = scmp.eq.s32.totalorder %s23, 0
      %p79 = por %p77, %p78
      %p80 = scmp.ne.s32.totalorder %s68, %s69
      %p81 = scmp.eq.s32.totalorder %s24, 3
      %p82 = por %p80, %p81
      %p84 = scmp.ne.s32.totalorder %s69, %s83
      %p85 = scmp.eq.s32.totalorder %s24, 0
      %p86 = por %p84, %p85
      %s88 = sadd.s32 %s87, 1
      %p91 = scmp.eq.s32.totalorder %s18, 3
      %p92 = scmp.ne.s32.totalorder %s87, %s89
      %p93 = scmp.eq.s32.totalorder %s18, 0
      %p94 = por %p92, %p93
      %p95 = scmp.ne.s32.totalorder %s87, %s89
      %p96 = scmp.eq.s32.totalorder %s23, 3
      %p97 = por %p95, %p96
      %p98 = scmp.ne.s32.totalorder %s89, %s90
      %p99 = scmp.eq.s32.totalorder %s23, 0
      %p100 = por %p98, %p99
      %p101 = scmp.ne.s32.totalorder %s89, %s90
      %p102 = scmp.eq.s32.totalorder %s24, 3
      %p103 = por %p101, %p102
      %p105 = scmp.ne.s32.totalorder %s90, %s104
      %p106 = scmp.eq.s32.totalorder %s24, 0
      %p107 = por %p105, %p106
      %s109 = sadd.s32 %s108, 1
      %p112 = scmp.eq.s32.totalorder %s18, 3
      %p113 = scmp.ne.s32.totalorder %s108, %s110
      %p114 = scmp.eq.s32.totalorder %s18, 0
      %p115 = por %p113, %p114
      %p116 = scmp.ne.s32.totalorder %s108, %s110
      %p117 = scmp.eq.s32.totalorder %s23, 3
      %p118 = por %p116, %p117
      %p119 = scmp.ne.s32.totalorder %s110, %s111
      %p120 = scmp.eq.s32.totalorder %s23, 0
      %p121 = por %p119, %p120
      %p122 = scmp.ne.s32.totalorder %s110, %s111
      %p123 = scmp.eq.s32.totalorder %s24, 3
      %p124 = por %p122, %p123
      %p126 = scmp.ne.s32.totalorder %s111, %s125
      %p127 = scmp.eq.s32.totalorder %s24, 0
      %p128 = por %p126, %p127
      %s130 = sadd.s32 %s129, 1
      %p133 = scmp.eq.s32.totalorder %s18, 3
      %p134 = scmp.ne.s32.totalorder %s129, %s131
      %p135 = scmp.eq.s32.totalorder %s18, 0
      %p136 = por %p134, %p135
      %p137 = scmp.ne.s32.totalorder %s129, %s131
      %p138 = scmp.eq.s32.totalorder %s23, 3
      %p139 = por %p137, %p138
      %p140 = scmp.ne.s32.totalorder %s131, %s132
      %p141 = scmp.eq.s32.totalorder %s23, 0
      %p142 = por %p140, %p141
      %p143 = scmp.ne.s32.totalorder %s131, %s132
      %p144 = scmp.eq.s32.totalorder %s24, 3
      %p145 = por %p143, %p144
      %p147 = scmp.ne.s32.totalorder %s132, %s146
      %p148 = scmp.eq.s32.totalorder %s24, 0
      %p149 = por %p147, %p148
      %s150 = ssub.s32 %s25, %s37
      %p151 = scmp.eq.s32.totalorder %s150, 0
      %s153 = sadd.s32 %s152, 1
      %s154 = scalar_select %p151, %s152, %s153
      %p157 = pneg %p151
      %p158 = scmp.eq.s32.totalorder %s18, 3
      %p159 = por %p157, %p158
      %p160 = scmp.ne.s32.totalorder %s152, %s155
      %p161 = scmp.eq.s32.totalorder %s18, 0
      %p162 = por %p160, %p161
      %p163 = scmp.ne.s32.totalorder %s152, %s155
      %p164 = scmp.eq.s32.totalorder %s23, 3
      %p165 = por %p163, %p164
      %p166 = scmp.ne.s32.totalorder %s155, %s156
      %p167 = scmp.eq.s32.totalorder %s23, 0
      %p168 = por %p166, %p167
      %p169 = scmp.ne.s32.totalorder %s155, %s156
      %p170 = scmp.eq.s32.totalorder %s24, 3
      %p171 = por %p169, %p170
      %p173 = scmp.ne.s32.totalorder %s156, %s172
      %p174 = scmp.eq.s32.totalorder %s24, 0
      %p175 = por %p173, %p174
      %p176 = scmp.le.s32.totalorder 1, %s18
      %p177 = scmp.lt.s32.totalorder %s18, 5
      %p178 = pnand %p176, %p177
      %p179 = pneg %p178
      // Predicated region
      $region9: #{tpu_custom_call.1} parent=5 // pred_check
        _
      $region10: #{tpu_custom_call.1} parent=5 // pred_check_branch
        %181 = sbr.rel (%p178) target = $region12
      $region11: #{tpu_custom_call.1} parent=5 // pred_region
        %s182 = ssub.s32 %s18, 1
        // Predicated region
        $region13: #{tpu_custom_call.1} parent=11 // pred_check
          %p183 = pneg %p79
        $region14: #{tpu_custom_call.1} parent=11 // pred_check_branch
          %185 = sbr.rel (%p183) target = $region16
        $region15: #{tpu_custom_call.1} parent=11 // pred_region
          %s187 = ssub.s32 6144, 6144
          %188 = vsyncadd [#allocation7], %s187
          %s189 = sshll.u32 [#allocation6], 4
          %s190 = int_to_ptr.vmem [resolvable:$true] %s189
          %195 = dma.hbm_to_vmem [thread:$0]  %s1, 6144, %s190, [#allocation7], 64, 64, 4
        $region16: #{tpu_custom_call.1} parent=11 // pred_fallthru
          _
        // Predicated region
        $region17: #{tpu_custom_call.1} parent=11 // pred_check
          %p196 = pneg %p100
        $region18: #{tpu_custom_call.1} parent=11 // pred_check_branch
          %198 = sbr.rel (%p196) target = $region20
        $region19: #{tpu_custom_call.1} parent=11 // pred_region
          _
        $region20: #{tpu_custom_call.1} parent=11 // pred_fallthru
          _
        // Predicated region
        $region21: #{tpu_custom_call.1} parent=11 // pred_check
          %p199 = pneg %p121
        $region22: #{tpu_custom_call.1} parent=11 // pred_check_branch
          %201 = sbr.rel (%p199) target = $region24
        $region23: #{tpu_custom_call.1} parent=11 // pred_region
          %s203 = ssub.s32 1024, 1024
          %204 = vsyncadd [#allocation7], %s203
          %s205 = sshll.u32 [#allocation8], 4
          %s206 = int_to_ptr.vmem [resolvable:$true] %s205
          %211 = dma.hbm_to_vmem [thread:$0]  %s3, 1024, %s206, [#allocation7], 64, 64, 4
        $region24: #{tpu_custom_call.1} parent=11 // pred_fallthru
          _
        // Predicated region
        $region25: #{tpu_custom_call.1} parent=11 // pred_check
          %p212 = pneg %p142
        $region26: #{tpu_custom_call.1} parent=11 // pred_check_branch
          %214 = sbr.rel (%p212) target = $region28
        $region27: #{tpu_custom_call.1} parent=11 // pred_region
          _
        $region28: #{tpu_custom_call.1} parent=11 // pred_fallthru
          _
      $region12: #{tpu_custom_call.1} parent=5 // pred_fallthru
        _
      %p215 = scmp.lt.s32.totalorder %s18, 4
      // Predicated region
      $region29: #{tpu_custom_call.1} parent=5 // pred_check
        %p216 = pneg %p215
      $region30: #{tpu_custom_call.1} parent=5 // pred_check_branch
        %218 = sbr.rel (%p216) target = $region32
      $region31: #{tpu_custom_call.1} parent=5 // pred_region
        // Predicated region
        $region33: #{tpu_custom_call.1} parent=31 // pred_check
          %p219 = pneg %p52
        $region34: #{tpu_custom_call.1} parent=31 // pred_check_branch
          %221 = sbr.rel (%p219) target = $region36
        $region35: #{tpu_custom_call.1} parent=31 // pred_region
          %s222 = sand.u32 %s42, 1
          %s223 = scalar_lea.sflag [#allocation4], %s222
          %s224 = sand.u32 %s42, 1
          %s225 = smul.addr %s224, 384
          %s226 = scalar_lea.vmem [#allocation3], %s225
          %s227 = smul.u32 8, %s26
          %s229 = ssub.s32 6144, 6144
          %230 = vsyncadd %s223, %s229
          %s231 = smul.addr %s227, 12
          %s232 = smul.addr %s25, 192
          %s233 = sadd.s32 %s231, %s232
          %s234 = smul.addr %s233, 64
          %s235 = scalar_lea.hbm %s0, %s234
          %s236 = sshll.u32 %s226, 4
          %s237 = int_to_ptr.vmem [resolvable:$true] %s236
          %242 = dma.hbm_to_vmem [thread:$0]  %s235, 6144, %s237, %s223, 384, 384, 24
        $region36: #{tpu_custom_call.1} parent=31 // pred_fallthru
          _
      $region32: #{tpu_custom_call.1} parent=5 // pred_fallthru
        _
      %p243 = scmp.le.s32.totalorder 1, %s18
      %p244 = scmp.lt.s32.totalorder %s18, 5
      %p245 = pnand %p243, %p244
      %p246 = pneg %p245
      // Predicated region
      $region37: #{tpu_custom_call.1} parent=5 // pred_check
        _
      $region38: #{tpu_custom_call.1} parent=5 // pred_check_branch
        %248 = sbr.rel (%p245) target = $region40
      $region39: #{tpu_custom_call.1} parent=5 // pred_region
        %s249 = ssub.s32 %s18, 1
        %s250 = sand.u32 %s45, 1
        %s251 = scalar_lea.sflag [#allocation4], %s250
        %s252 = sand.u32 %s45, 1
        %s253 = smul.addr %s252, 384
        %s254 = scalar_lea.vmem [#allocation3], %s253
        // Predicated region
        $region41: #{tpu_custom_call.1} parent=39 // pred_check
          %p255 = pneg %p58
        $region42: #{tpu_custom_call.1} parent=39 // pred_check_branch
          %257 = sbr.rel (%p255) target = $region44
        $region43: #{tpu_custom_call.1} parent=39 // pred_region
          %258 = dma.done %s251, 6144
        $region44: #{tpu_custom_call.1} parent=39 // pred_fallthru
          _
        // Predicated region
        $region45: #{tpu_custom_call.1} parent=39 // pred_check
          %p259 = pneg %p79
        $region46: #{tpu_custom_call.1} parent=39 // pred_check_branch
          %261 = sbr.rel (%p259) target = $region48
        $region47: #{tpu_custom_call.1} parent=39 // pred_region
          %262 = dma.done [#allocation7], 6144
        $region48: #{tpu_custom_call.1} parent=39 // pred_fallthru
          _
        // Predicated region
        $region49: #{tpu_custom_call.1} parent=39 // pred_check
          %p263 = pneg %p121
        $region50: #{tpu_custom_call.1} parent=39 // pred_check_branch
          %265 = sbr.rel (%p263) target = $region52
        $region51: #{tpu_custom_call.1} parent=39 // pred_region
          %266 = dma.done [#allocation7], 1024
        $region52: #{tpu_custom_call.1} parent=39 // pred_fallthru
          _
        %s267 = sand.u32 %s45, 1
        %s268 = scalar_lea.sflag [#allocation4], %s267
        %s269 = sand.u32 %s45, 1
        %s270 = smul.addr %s269, 384
        %s271 = scalar_lea.vmem [#allocation3], %s270
        %p272 = pneg %p58
        %p273 = pneg %p55
        %p274 = pneg %p79
        %p275 = pneg %p76
        %p276 = pneg %p100
        %p277 = pneg %p97
        %p278 = pneg %p121
        %p279 = pneg %p118
        %p280 = pneg %p142
        %p281 = pneg %p139
        %p282 = pneg %p168
        %p283 = pneg %p165
        %s284 = sand.u32 %s155, 1
        %s285 = scalar_lea.sflag [#allocation5], %s284
        %s286 = sand.u32 %s155, 1
        %s287 = scalar_lea.vmem [#allocation9], %s286
        %s288 = smul.u32 8, %s28
        %p290 = scmp.eq.s32.totalorder %s28, 0
        // Predicated region
        $region53: #{tpu_custom_call.1} parent=39 // pred_check
          %p291 = pneg %p290
        $region54: #{tpu_custom_call.1} parent=39 // pred_check_branch
          %293 = sbr.rel (%p291) target = $region56
        $region55: #{tpu_custom_call.1} parent=39 // pred_region
          %294 = vst [vmem:[#allocation2] sm:$0xff] -inf
          %295 = vst [vmem:[#allocation2 + $0x8] sm:$0xff] -inf
        $region56: #{tpu_custom_call.1} parent=39 // pred_fallthru
          _
        %v296 = vld [vmem:[%s254] sm:$0xff]
        %v297 = vld [vmem:[%s254 + $0x8] sm:$0xff]
        %v298 = vld [vmem:[%s254 + $0x10] sm:$0xff]
        %v299 = vld [vmem:[%s254 + $0x18] sm:$0xff]
        %v300 = vld [vmem:[%s254 + $0x20] sm:$0xff]
        %v301 = vld [vmem:[%s254 + $0x28] sm:$0xff]
        %v302 = vld [vmem:[%s254 + $0x30] sm:$0xff]
        %v303 = vld [vmem:[%s254 + $0x38] sm:$0xff]
        %v304 = vld [vmem:[%s254 + $0x40] sm:$0xff]
        %v305 = vld [vmem:[%s254 + $0x48] sm:$0xff]
        %v306 = vld [vmem:[%s254 + $0x50] sm:$0xff]
        %v307 = vld [vmem:[%s254 + $0x58] sm:$0xff]
        %v308 = vld [vmem:[%s254 + $0x60] sm:$0xff]
        %v309 = vld [vmem:[%s254 + $0x68] sm:$0xff]
        %v310 = vld [vmem:[%s254 + $0x70] sm:$0xff]
        %v311 = vld [vmem:[%s254 + $0x78] sm:$0xff]
        %v312 = vld [vmem:[%s254 + $0x80] sm:$0xff]
        %v313 = vld [vmem:[%s254 + $0x88] sm:$0xff]
        %v314 = vld [vmem:[%s254 + $0x90] sm:$0xff]
        %v315 = vld [vmem:[%s254 + $0x98] sm:$0xff]
        %v316 = vld [vmem:[%s254 + $0xa0] sm:$0xff]
        %v317 = vld [vmem:[%s254 + $0xa8] sm:$0xff]
        %v318 = vld [vmem:[%s254 + $0xb0] sm:$0xff]
        %v319 = vld [vmem:[%s254 + $0xb8] sm:$0xff]
        %v320 = vld [vmem:[%s254 + $0xc0] sm:$0xff]
        %v321 = vld [vmem:[%s254 + $0xc8] sm:$0xff]
        %v322 = vld [vmem:[%s254 + $0xd0] sm:$0xff]
        %v323 = vld [vmem:[%s254 + $0xd8] sm:$0xff]
        %v324 = vld [vmem:[%s254 + $0xe0] sm:$0xff]
        %v325 = vld [vmem:[%s254 + $0xe8] sm:$0xff]
        %v326 = vld [vmem:[%s254 + $0xf0] sm:$0xff]
        %v327 = vld [vmem:[%s254 + $0xf8] sm:$0xff]
        %v328 = vld [vmem:[%s254 + $0x100] sm:$0xff]
        %v329 = vld [vmem:[%s254 + $0x108] sm:$0xff]
        %v330 = vld [vmem:[%s254 + $0x110] sm:$0xff]
        %v331 = vld [vmem:[%s254 + $0x118] sm:$0xff]
        %v332 = vld [vmem:[%s254 + $0x120] sm:$0xff]
        %v333 = vld [vmem:[%s254 + $0x128] sm:$0xff]
        %v334 = vld [vmem:[%s254 + $0x130] sm:$0xff]
        %v335 = vld [vmem:[%s254 + $0x138] sm:$0xff]
        %v336 = vld [vmem:[%s254 + $0x140] sm:$0xff]
        %v337 = vld [vmem:[%s254 + $0x148] sm:$0xff]
        %v338 = vld [vmem:[%s254 + $0x150] sm:$0xff]
        %v339 = vld [vmem:[%s254 + $0x158] sm:$0xff]
        %v340 = vld [vmem:[%s254 + $0x160] sm:$0xff]
        %v341 = vld [vmem:[%s254 + $0x168] sm:$0xff]
        %v342 = vld [vmem:[%s254 + $0x170] sm:$0xff]
        %v343 = vld [vmem:[%s254 + $0x178] sm:$0xff]
        %v344 = vld [vmem:[#allocation6] sm:$0xf]
        %v345 = vld [vmem:[#allocation6 + $0x4] sm:$0xf]
        %v346 = vld [vmem:[#allocation6 + $0x8] sm:$0xf]
        %v347 = vld [vmem:[#allocation6 + $0xc] sm:$0xf]
        %v348 = vld [vmem:[#allocation6 + $0x10] sm:$0xf]
        %v349 = vld [vmem:[#allocation6 + $0x14] sm:$0xf]
        %v350 = vld [vmem:[#allocation6 + $0x18] sm:$0xf]
        %v351 = vld [vmem:[#allocation6 + $0x1c] sm:$0xf]
        %v352 = vld [vmem:[#allocation6 + $0x20] sm:$0xf]
        %v353 = vld [vmem:[#allocation6 + $0x24] sm:$0xf]
        %v354 = vld [vmem:[#allocation6 + $0x28] sm:$0xf]
        %v355 = vld [vmem:[#allocation6 + $0x2c] sm:$0xf]
        %v356 = vld [vmem:[#allocation6 + $0x30] sm:$0xf]
        %v357 = vld [vmem:[#allocation6 + $0x34] sm:$0xf]
        %v358 = vld [vmem:[#allocation6 + $0x38] sm:$0xf]
        %v359 = vld [vmem:[#allocation6 + $0x3c] sm:$0xf]
        %v360 = vld [vmem:[#allocation6 + $0x40] sm:$0xf]
        %v361 = vld [vmem:[#allocation6 + $0x44] sm:$0xf]
        %v362 = vld [vmem:[#allocation6 + $0x48] sm:$0xf]
        %v363 = vld [vmem:[#allocation6 + $0x4c] sm:$0xf]
        %v364 = vld [vmem:[#allocation6 + $0x50] sm:$0xf]
        %v365 = vld [vmem:[#allocation6 + $0x54] sm:$0xf]
        %v366 = vld [vmem:[#allocation6 + $0x58] sm:$0xf]
        %v367 = vld [vmem:[#allocation6 + $0x5c] sm:$0xf]
        %v368 = vld [vmem:[#allocation6 + $0x60] sm:$0xf]
        %v369 = vld [vmem:[#allocation6 + $0x64] sm:$0xf]
        %v370 = vld [vmem:[#allocation6 + $0x68] sm:$0xf]
        %v371 = vld [vmem:[#allocation6 + $0x6c] sm:$0xf]
        %v372 = vld [vmem:[#allocation6 + $0x70] sm:$0xf]
        %v373 = vld [vmem:[#allocation6 + $0x74] sm:$0xf]
        %v374 = vld [vmem:[#allocation6 + $0x78] sm:$0xf]
        %v375 = vld [vmem:[#allocation6 + $0x7c] sm:$0xf]
        %v376 = vld [vmem:[#allocation6 + $0x80] sm:$0xf]
        %v377 = vld [vmem:[#allocation6 + $0x84] sm:$0xf]
        %v378 = vld [vmem:[#allocation6 + $0x88] sm:$0xf]
        %v379 = vld [vmem:[#allocation6 + $0x8c] sm:$0xf]
        %v380 = vld [vmem:[#allocation6 + $0x90] sm:$0xf]
        %v381 = vld [vmem:[#allocation6 + $0x94] sm:$0xf]
        %v382 = vld [vmem:[#allocation6 + $0x98] sm:$0xf]
        %v383 = vld [vmem:[#allocation6 + $0x9c] sm:$0xf]
        %v384 = vld [vmem:[#allocation6 + $0xa0] sm:$0xf]
        %v385 = vld [vmem:[#allocation6 + $0xa4] sm:$0xf]
        %v386 = vld [vmem:[#allocation6 + $0xa8] sm:$0xf]
        %v387 = vld [vmem:[#allocation6 + $0xac] sm:$0xf]
        %v388 = vld [vmem:[#allocation6 + $0xb0] sm:$0xf]
        %v389 = vld [vmem:[#allocation6 + $0xb4] sm:$0xf]
        %v390 = vld [vmem:[#allocation6 + $0xb8] sm:$0xf]
        %v391 = vld [vmem:[#allocation6 + $0xbc] sm:$0xf]
        %v392 = vld [vmem:[#allocation6 + $0xc0] sm:$0xf]
        %v393 = vld [vmem:[#allocation6 + $0xc4] sm:$0xf]
        %v394 = vld [vmem:[#allocation6 + $0xc8] sm:$0xf]
        %v395 = vld [vmem:[#allocation6 + $0xcc] sm:$0xf]
        %v396 = vld [vmem:[#allocation6 + $0xd0] sm:$0xf]
        %v397 = vld [vmem:[#allocation6 + $0xd4] sm:$0xf]
        %v398 = vld [vmem:[#allocation6 + $0xd8] sm:$0xf]
        %v399 = vld [vmem:[#allocation6 + $0xdc] sm:$0xf]
        %v400 = vld [vmem:[#allocation6 + $0xe0] sm:$0xf]
        %v401 = vld [vmem:[#allocation6 + $0xe4] sm:$0xf]
        %v402 = vld [vmem:[#allocation6 + $0xe8] sm:$0xf]
        %v403 = vld [vmem:[#allocation6 + $0xec] sm:$0xf]
        %v404 = vld [vmem:[#allocation6 + $0xf0] sm:$0xf]
        %v405 = vld [vmem:[#allocation6 + $0xf4] sm:$0xf]
        %v406 = vld [vmem:[#allocation6 + $0xf8] sm:$0xf]
        %v407 = vld [vmem:[#allocation6 + $0xfc] sm:$0xf]
        %v408 = vld [vmem:[#allocation6 + $0x100] sm:$0xf]
        %v409 = vld [vmem:[#allocation6 + $0x104] sm:$0xf]
        %v410 = vld [vmem:[#allocation6 + $0x108] sm:$0xf]
        %v411 = vld [vmem:[#allocation6 + $0x10c] sm:$0xf]
        %v412 = vld [vmem:[#allocation6 + $0x110] sm:$0xf]
        %v413 = vld [vmem:[#allocation6 + $0x114] sm:$0xf]
        %v414 = vld [vmem:[#allocation6 + $0x118] sm:$0xf]
        %v415 = vld [vmem:[#allocation6 + $0x11c] sm:$0xf]
        %v416 = vld [vmem:[#allocation6 + $0x120] sm:$0xf]
        %v417 = vld [vmem:[#allocation6 + $0x124] sm:$0xf]
        %v418 = vld [vmem:[#allocation6 + $0x128] sm:$0xf]
        %v419 = vld [vmem:[#allocation6 + $0x12c] sm:$0xf]
        %v420 = vld [vmem:[#allocation6 + $0x130] sm:$0xf]
        %v421 = vld [vmem:[#allocation6 + $0x134] sm:$0xf]
        %v422 = vld [vmem:[#allocation6 + $0x138] sm:$0xf]
        %v423 = vld [vmem:[#allocation6 + $0x13c] sm:$0xf]
        %v424 = vld [vmem:[#allocation6 + $0x140] sm:$0xf]
        %v425 = vld [vmem:[#allocation6 + $0x144] sm:$0xf]
        %v426 = vld [vmem:[#allocation6 + $0x148] sm:$0xf]
        %v427 = vld [vmem:[#allocation6 + $0x14c] sm:$0xf]
        %v428 = vld [vmem:[#allocation6 + $0x150] sm:$0xf]
        %v429 = vld [vmem:[#allocation6 + $0x154] sm:$0xf]
        %v430 = vld [vmem:[#allocation6 + $0x158] sm:$0xf]
        %v431 = vld [vmem:[#allocation6 + $0x15c] sm:$0xf]
        %v432 = vld [vmem:[#allocation6 + $0x160] sm:$0xf]
        %v433 = vld [vmem:[#allocation6 + $0x164] sm:$0xf]
        %v434 = vld [vmem:[#allocation6 + $0x168] sm:$0xf]
        %v435 = vld [vmem:[#allocation6 + $0x16c] sm:$0xf]
        %v436 = vld [vmem:[#allocation6 + $0x170] sm:$0xf]
        %v437 = vld [vmem:[#allocation6 + $0x174] sm:$0xf]
        %v438 = vld [vmem:[#allocation6 + $0x178] sm:$0xf]
        %v439 = vld [vmem:[#allocation6 + $0x17c] sm:$0xf]
        %v440 = vld [vmem:[%s2] sm:$0x1]
        %v442 = vlaneseq
        %v443 = vshrl.u32 %v442, 7
        %v444 = vsub.s32 0, %v443
        %v445 = vrot.slane %v440, %v444
        %v495 = vunpack.c.l.b16 %v296
        %v496 = vunpack.c.h.b16 %v296
        %v497 = vunpack.c.l.b16 %v297
        %v498 = vunpack.c.h.b16 %v297
        %v499 = vunpack.c.l.b16 %v298
        %v500 = vunpack.c.h.b16 %v298
        %v501 = vunpack.c.l.b16 %v299
        %v502 = vunpack.c.h.b16 %v299
        %v503 = vunpack.c.l.b16 %v300
        %v504 = vunpack.c.h.b16 %v300
        %v505 = vunpack.c.l.b16 %v301
        %v506 = vunpack.c.h.b16 %v301
        %v507 = vunpack.c.l.b16 %v302
        %v508 = vunpack.c.h.b16 %v302
        %v509 = vunpack.c.l.b16 %v303
        %v510 = vunpack.c.h.b16 %v303
        %v511 = vunpack.c.l.b16 %v304
        %v512 = vunpack.c.h.b16 %v304
        %v513 = vunpack.c.l.b16 %v305
        %v514 = vunpack.c.h.b16 %v305
        %v515 = vunpack.c.l.b16 %v306
        %v516 = vunpack.c.h.b16 %v306
        %v517 = vunpack.c.l.b16 %v307
        %v518 = vunpack.c.h.b16 %v307
        %v519 = vunpack.c.l.b16 %v308
        %v520 = vunpack.c.h.b16 %v308
        %v521 = vunpack.c.l.b16 %v309
        %v522 = vunpack.c.h.b16 %v309
        %v523 = vunpack.c.l.b16 %v310
        %v524 = vunpack.c.h.b16 %v310
        %v525 = vunpack.c.l.b16 %v311
        %v526 = vunpack.c.h.b16 %v311
        %v527 = vunpack.c.l.b16 %v312
        %v528 = vunpack.c.h.b16 %v312
        %v529 = vunpack.c.l.b16 %v313
        %v530 = vunpack.c.h.b16 %v313
        %v531 = vunpack.c.l.b16 %v314
        %v532 = vunpack.c.h.b16 %v314
        %v533 = vunpack.c.l.b16 %v315
        %v534 = vunpack.c.h.b16 %v315
        %v535 = vunpack.c.l.b16 %v316
        %v536 = vunpack.c.h.b16 %v316
        %v537 = vunpack.c.l.b16 %v317
        %v538 = vunpack.c.h.b16 %v317
        %v539 = vunpack.c.l.b16 %v318
        %v540 = vunpack.c.h.b16 %v318
        %v541 = vunpack.c.l.b16 %v319
        %v542 = vunpack.c.h.b16 %v319
        %v543 = vunpack.c.l.b16 %v320
        %v544 = vunpack.c.h.b16 %v320
        %v545 = vunpack.c.l.b16 %v321
        %v546 = vunpack.c.h.b16 %v321
        %v547 = vunpack.c.l.b16 %v322
        %v548 = vunpack.c.h.b16 %v322
        %v549 = vunpack.c.l.b16 %v323
        %v550 = vunpack.c.h.b16 %v323
        %v551 = vunpack.c.l.b16 %v324
        %v552 = vunpack.c.h.b16 %v324
        %v553 = vunpack.c.l.b16 %v325
        %v554 = vunpack.c.h.b16 %v325
        %v555 = vunpack.c.l.b16 %v326
        %v556 = vunpack.c.h.b16 %v326
        %v557 = vunpack.c.l.b16 %v327
        %v558 = vunpack.c.h.b16 %v327
        %v559 = vunpack.c.l.b16 %v328
        %v560 = vunpack.c.h.b16 %v328
        %v561 = vunpack.c.l.b16 %v329
        %v562 = vunpack.c.h.b16 %v329
        %v563 = vunpack.c.l.b16 %v330
        %v564 = vunpack.c.h.b16 %v330
        %v565 = vunpack.c.l.b16 %v331
        %v566 = vunpack.c.h.b16 %v331
        %v567 = vunpack.c.l.b16 %v332
        %v568 = vunpack.c.h.b16 %v332
        %v569 = vunpack.c.l.b16 %v333
        %v570 = vunpack.c.h.b16 %v333
        %v571 = vunpack.c.l.b16 %v334
        %v572 = vunpack.c.h.b16 %v334
        %v573 = vunpack.c.l.b16 %v335
        %v574 = vunpack.c.h.b16 %v335
        %v575 = vunpack.c.l.b16 %v336
        %v576 = vunpack.c.h.b16 %v336
        %v577 = vunpack.c.l.b16 %v337
        %v578 = vunpack.c.h.b16 %v337
        %v579 = vunpack.c.l.b16 %v338
        %v580 = vunpack.c.h.b16 %v338
        %v581 = vunpack.c.l.b16 %v339
        %v582 = vunpack.c.h.b16 %v339
        %v583 = vunpack.c.l.b16 %v340
        %v584 = vunpack.c.h.b16 %v340
        %v585 = vunpack.c.l.b16 %v341
        %v586 = vunpack.c.h.b16 %v341
        %v587 = vunpack.c.l.b16 %v342
        %v588 = vunpack.c.h.b16 %v342
        %v589 = vunpack.c.l.b16 %v343
        %v590 = vunpack.c.h.b16 %v343
        %v591 = vpack.c.b16 %v501, %v495
        %v592 = vpack.c.b16 %v502, %v496
        %v593 = vpack.c.b16 %v503, %v497
        %v594 = vpack.c.b16 %v504, %v498
        %v595 = vpack.c.b16 %v505, %v499
        %v596 = vpack.c.b16 %v506, %v500
        %v597 = vpack.c.b16 %v513, %v507
        %v598 = vpack.c.b16 %v514, %v508
        %v599 = vpack.c.b16 %v515, %v509
        %v600 = vpack.c.b16 %v516, %v510
        %v601 = vpack.c.b16 %v517, %v511
        %v602 = vpack.c.b16 %v518, %v512
        %v603 = vpack.c.b16 %v525, %v519
        %v604 = vpack.c.b16 %v526, %v520
        %v605 = vpack.c.b16 %v527, %v521
        %v606 = vpack.c.b16 %v528, %v522
        %v607 = vpack.c.b16 %v529, %v523
        %v608 = vpack.c.b16 %v530, %v524
        %v609 = vpack.c.b16 %v537, %v531
        %v610 = vpack.c.b16 %v538, %v532
        %v611 = vpack.c.b16 %v539, %v533
        %v612 = vpack.c.b16 %v540, %v534
        %v613 = vpack.c.b16 %v541, %v535
        %v614 = vpack.c.b16 %v542, %v536
        %v615 = vpack.c.b16 %v549, %v543
        %v616 = vpack.c.b16 %v550, %v544
        %v617 = vpack.c.b16 %v551, %v545
        %v618 = vpack.c.b16 %v552, %v546
        %v619 = vpack.c.b16 %v553, %v547
        %v620 = vpack.c.b16 %v554, %v548
        %v621 = vpack.c.b16 %v561, %v555
        %v622 = vpack.c.b16 %v562, %v556
        %v623 = vpack.c.b16 %v563, %v557
        %v624 = vpack.c.b16 %v564, %v558
        %v625 = vpack.c.b16 %v565, %v559
        %v626 = vpack.c.b16 %v566, %v560
        %v627 = vpack.c.b16 %v573, %v567
        %v628 = vpack.c.b16 %v574, %v568
        %v629 = vpack.c.b16 %v575, %v569
        %v630 = vpack.c.b16 %v576, %v570
        %v631 = vpack.c.b16 %v577, %v571
        %v632 = vpack.c.b16 %v578, %v572
        %v633 = vpack.c.b16 %v585, %v579
        %v634 = vpack.c.b16 %v586, %v580
        %v635 = vpack.c.b16 %v587, %v581
        %v636 = vpack.c.b16 %v588, %v582
        %v637 = vpack.c.b16 %v589, %v583
        %v638 = vpack.c.b16 %v590, %v584
        %v783 = vunpack.c.l.b16 %v344
        %v784 = vunpack.c.l.b16 %v345
        %v785 = vunpack.c.l.b16 %v346
        %v786 = vunpack.c.l.b16 %v347
        %v787 = vunpack.c.l.b16 %v348
        %v788 = vunpack.c.l.b16 %v349
        %v789 = vunpack.c.l.b16 %v350
        %v790 = vunpack.c.l.b16 %v351
        %v791 = vunpack.c.l.b16 %v352
        %v792 = vunpack.c.l.b16 %v353
        %v793 = vunpack.c.l.b16 %v354
        %v794 = vunpack.c.l.b16 %v355
        %v795 = vunpack.c.l.b16 %v356
        %v796 = vunpack.c.l.b16 %v357
        %v797 = vunpack.c.l.b16 %v358
        %v798 = vunpack.c.l.b16 %v359
        %v799 = vunpack.c.l.b16 %v360
        %v800 = vunpack.c.l.b16 %v361
        %v801 = vunpack.c.l.b16 %v362
        %v802 = vunpack.c.l.b16 %v363
        %v803 = vunpack.c.l.b16 %v364
        %v804 = vunpack.c.l.b16 %v365
        %v805 = vunpack.c.l.b16 %v366
        %v806 = vunpack.c.l.b16 %v367
        %v807 = vunpack.c.l.b16 %v368
        %v808 = vunpack.c.l.b16 %v369
        %v809 = vunpack.c.l.b16 %v370
        %v810 = vunpack.c.l.b16 %v371
        %v811 = vunpack.c.l.b16 %v372
        %v812 = vunpack.c.l.b16 %v373
        %v813 = vunpack.c.l.b16 %v374
        %v814 = vunpack.c.l.b16 %v375
        %v815 = vunpack.c.l.b16 %v376
        %v816 = vunpack.c.l.b16 %v377
        %v817 = vunpack.c.l.b16 %v378
        %v818 = vunpack.c.l.b16 %v379
        %v819 = vunpack.c.l.b16 %v380
        %v820 = vunpack.c.l.b16 %v381
        %v821 = vunpack.c.l.b16 %v382
        %v822 = vunpack.c.l.b16 %v383
        %v823 = vunpack.c.l.b16 %v384
        %v824 = vunpack.c.l.b16 %v385
        %v825 = vunpack.c.l.b16 %v386
        %v826 = vunpack.c.l.b16 %v387
        %v827 = vunpack.c.l.b16 %v388
        %v828 = vunpack.c.l.b16 %v389
        %v829 = vunpack.c.l.b16 %v390
        %v830 = vunpack.c.l.b16 %v391
        %v831 = vunpack.c.l.b16 %v392
        %v832 = vunpack.c.l.b16 %v393
        %v833 = vunpack.c.l.b16 %v394
        %v834 = vunpack.c.l.b16 %v395
        %v835 = vunpack.c.l.b16 %v396
        %v836 = vunpack.c.l.b16 %v397
        %v837 = vunpack.c.l.b16 %v398
        %v838 = vunpack.c.l.b16 %v399
        %v839 = vunpack.c.l.b16 %v400
        %v840 = vunpack.c.l.b16 %v401
        %v841 = vunpack.c.l.b16 %v402
        %v842 = vunpack.c.l.b16 %v403
        %v843 = vunpack.c.l.b16 %v404
        %v844 = vunpack.c.l.b16 %v405
        %v845 = vunpack.c.l.b16 %v406
        %v846 = vunpack.c.l.b16 %v407
        %v847 = vunpack.c.l.b16 %v408
        %v848 = vunpack.c.l.b16 %v409
        %v849 = vunpack.c.l.b16 %v410
        %v850 = vunpack.c.l.b16 %v411
        %v851 = vunpack.c.l.b16 %v412
        %v852 = vunpack.c.l.b16 %v413
        %v853 = vunpack.c.l.b16 %v414
        %v854 = vunpack.c.l.b16 %v415
        %v855 = vunpack.c.l.b16 %v416
        %v856 = vunpack.c.l.b16 %v417
        %v857 = vunpack.c.l.b16 %v418
        %v858 = vunpack.c.l.b16 %v419
        %v859 = vunpack.c.l.b16 %v420
        %v860 = vunpack.c.l.b16 %v421
        %v861 = vunpack.c.l.b16 %v422
        %v862 = vunpack.c.l.b16 %v423
        %v863 = vunpack.c.l.b16 %v424
        %v864 = vunpack.c.l.b16 %v425
        %v865 = vunpack.c.l.b16 %v426
        %v866 = vunpack.c.l.b16 %v427
        %v867 = vunpack.c.l.b16 %v428
        %v868 = vunpack.c.l.b16 %v429
        %v869 = vunpack.c.l.b16 %v430
        %v870 = vunpack.c.l.b16 %v431
        %v871 = vunpack.c.l.b16 %v432
        %v872 = vunpack.c.l.b16 %v433
        %v873 = vunpack.c.l.b16 %v434
        %v874 = vunpack.c.l.b16 %v435
        %v875 = vunpack.c.l.b16 %v436
        %v876 = vunpack.c.l.b16 %v437
        %v877 = vunpack.c.l.b16 %v438
        %v878 = vunpack.c.l.b16 %v439
        %v879 = vpack.c.b16 %v784, %v783
        %v880 = vpack.c.b16 %v786, %v785
        %v881 = vpack.c.b16 %v788, %v787
        %v882 = vpack.c.b16 %v790, %v789
        %v883 = vpack.c.b16 %v792, %v791
        %v884 = vpack.c.b16 %v794, %v793
        %v885 = vpack.c.b16 %v796, %v795
        %v886 = vpack.c.b16 %v798, %v797
        %v887 = vpack.c.b16 %v800, %v799
        %v888 = vpack.c.b16 %v802, %v801
        %v889 = vpack.c.b16 %v804, %v803
        %v890 = vpack.c.b16 %v806, %v805
        %v891 = vpack.c.b16 %v808, %v807
        %v892 = vpack.c.b16 %v810, %v809
        %v893 = vpack.c.b16 %v812, %v811
        %v894 = vpack.c.b16 %v814, %v813
        %v895 = vpack.c.b16 %v816, %v815
        %v896 = vpack.c.b16 %v818, %v817
        %v897 = vpack.c.b16 %v820, %v819
        %v898 = vpack.c.b16 %v822, %v821
        %v899 = vpack.c.b16 %v824, %v823
        %v900 = vpack.c.b16 %v826, %v825
        %v901 = vpack.c.b16 %v828, %v827
        %v902 = vpack.c.b16 %v830, %v829
        %v903 = vpack.c.b16 %v832, %v831
        %v904 = vpack.c.b16 %v834, %v833
        %v905 = vpack.c.b16 %v836, %v835
        %v906 = vpack.c.b16 %v838, %v837
        %v907 = vpack.c.b16 %v840, %v839
        %v908 = vpack.c.b16 %v842, %v841
        %v909 = vpack.c.b16 %v844, %v843
        %v910 = vpack.c.b16 %v846, %v845
        %v911 = vpack.c.b16 %v848, %v847
        %v912 = vpack.c.b16 %v850, %v849
        %v913 = vpack.c.b16 %v852, %v851
        %v914 = vpack.c.b16 %v854, %v853
        %v915 = vpack.c.b16 %v856, %v855
        %v916 = vpack.c.b16 %v858, %v857
        %v917 = vpack.c.b16 %v860, %v859
        %v918 = vpack.c.b16 %v862, %v861
        %v919 = vpack.c.b16 %v864, %v863
        %v920 = vpack.c.b16 %v866, %v865
        %v921 = vpack.c.b16 %v868, %v867
        %v922 = vpack.c.b16 %v870, %v869
        %v923 = vpack.c.b16 %v872, %v871
        %v924 = vpack.c.b16 %v874, %v873
        %v925 = vpack.c.b16 %v876, %v875
        %v926 = vpack.c.b16 %v878, %v877
        %975 = vmatprep.subr.bf16.mxu0 0
        %976 = vmatpush1.bf16.msra.mxu0 %v886
        %977 = vmatprep.subr.bf16.mxu0 0
        %978 = vmatpush1.bf16.msra.mxu0 %v885
        %979 = vmatprep.subr.bf16.mxu0 0
        %980 = vmatpush1.bf16.msra.mxu0 %v884
        %981 = vmatprep.subr.bf16.mxu0 0
        %982 = vmatpush1.bf16.msra.mxu0 %v883
        %983 = vmatprep.subr.bf16.mxu0 0
        %984 = vmatpush1.bf16.msra.mxu0 %v882
        %985 = vmatprep.subr.bf16.mxu0 0
        %986 = vmatpush1.bf16.msra.mxu0 %v881
        %987 = vmatprep.subr.bf16.mxu0 0
        %988 = vmatpush1.bf16.msra.mxu0 %v880
        %989 = vmatprep.subr.bf16.mxu0 0
        %990 = vmatpush1.bf16.msra.mxu0 %v879
        %991 = vmatprep.subr.bf16.mxu0 0
        %992 = vmatpush2.bf16.msra.mxu0 %v894
        %993 = vmatprep.subr.bf16.mxu0 0
        %994 = vmatpush2.bf16.msra.mxu0 %v893
        %995 = vmatprep.subr.bf16.mxu0 0
        %996 = vmatpush2.bf16.msra.mxu0 %v892
        %997 = vmatprep.subr.bf16.mxu0 0
        %998 = vmatpush2.bf16.msra.mxu0 %v891
        %999 = vmatprep.subr.bf16.mxu0 0
        %1000 = vmatpush2.bf16.msra.mxu0 %v890
        %1001 = vmatprep.subr.bf16.mxu0 0
        %1002 = vmatpush2.bf16.msra.mxu0 %v889
        %1003 = vmatprep.subr.bf16.mxu0 0
        %1004 = vmatpush2.bf16.msra.mxu0 %v888
        %1005 = vmatprep.subr.bf16.mxu0 0
        %1006 = vmatpush2.bf16.msra.mxu0 %v887
        %1007 = vmatprep.mubr.bf16.mxu0 %v592
        %1008 = vmatmul.mubr.bf16.gmra.mxu0 %v591
        %v1009 = vpop.f32.mrf.mxu0
        %v1010 = vadd.f32 %v445, %v1009
        %v1011 = vpop.f32.mrf.mxu0
        %v1012 = vpop.f32.mrf.mxu0
        %v1013 = vadd.f32 %v445, %v1012
        %v1014 = vpop.f32.mrf.mxu0
        %1015 = vmatprep.mubr.bf16.mxu0 %v598
        %1016 = vmatmul.mubr.bf16.gmra.mxu0 %v597
        %v1017 = vpop.f32.mrf.mxu0
        %v1018 = vadd.f32 %v445, %v1017
        %v1019 = vpop.f32.mrf.mxu0
        %v1020 = vpop.f32.mrf.mxu0
        %v1021 = vadd.f32 %v445, %v1020
        %v1022 = vpop.f32.mrf.mxu0
        %1023 = vmatprep.mubr.bf16.mxu0 %v604
        %1024 = vmatmul.mubr.bf16.gmra.mxu0 %v603
        %v1025 = vpop.f32.mrf.mxu0
        %v1026 = vadd.f32 %v445, %v1025
        %v1027 = vpop.f32.mrf.mxu0
        %v1028 = vpop.f32.mrf.mxu0
        %v1029 = vadd.f32 %v445, %v1028
        %v1030 = vpop.f32.mrf.mxu0
        %1031 = vmatprep.mubr.bf16.mxu0 %v610
        %1032 = vmatmul.mubr.bf16.gmra.mxu0 %v609
        %v1033 = vpop.f32.mrf.mxu0
        %v1034 = vadd.f32 %v445, %v1033
        %v1035 = vpop.f32.mrf.mxu0
        %v1036 = vpop.f32.mrf.mxu0
        %v1037 = vadd.f32 %v445, %v1036
        %v1038 = vpop.f32.mrf.mxu0
        %1039 = vmatprep.mubr.bf16.mxu0 %v616
        %1040 = vmatmul.mubr.bf16.gmra.mxu0 %v615
        %v1041 = vpop.f32.mrf.mxu0
        %v1042 = vadd.f32 %v445, %v1041
        %v1043 = vpop.f32.mrf.mxu0
        %v1044 = vpop.f32.mrf.mxu0
        %v1045 = vadd.f32 %v445, %v1044
        %v1046 = vpop.f32.mrf.mxu0
        %1047 = vmatprep.mubr.bf16.mxu0 %v622
        %1048 = vmatmul.mubr.bf16.gmra.mxu0 %v621
        %v1049 = vpop.f32.mrf.mxu0
        %v1050 = vadd.f32 %v445, %v1049
        %v1051 = vpop.f32.mrf.mxu0
        %v1052 = vpop.f32.mrf.mxu0
        %v1053 = vadd.f32 %v445, %v1052
        %v1054 = vpop.f32.mrf.mxu0
        %1055 = vmatprep.mubr.bf16.mxu0 %v628
        %1056 = vmatmul.mubr.bf16.gmra.mxu0 %v627
        %v1057 = vpop.f32.mrf.mxu0
        %v1058 = vadd.f32 %v445, %v1057
        %v1059 = vpop.f32.mrf.mxu0
        %v1060 = vpop.f32.mrf.mxu0
        %v1061 = vadd.f32 %v445, %v1060
        %v1062 = vpop.f32.mrf.mxu0
        %1063 = vmatprep.mubr.bf16.mxu0 %v634
        %1064 = vmatmul.mubr.bf16.gmra.mxu0 %v633
        %v1065 = vpop.f32.mrf.mxu0
        %v1066 = vadd.f32 %v445, %v1065
        %v1067 = vpop.f32.mrf.mxu0
        %v1068 = vpop.f32.mrf.mxu0
        %v1069 = vadd.f32 %v445, %v1068
        %v1070 = vpop.f32.mrf.mxu0
        %1071 = vdwg.mxu0
        %1072 = vmatprep.subr.bf16.mxu0 0
        %1073 = vmatpush1.bf16.msra.mxu0 %v902
        %1074 = vmatprep.subr.bf16.mxu0 0
        %1075 = vmatpush1.bf16.msra.mxu0 %v901
        %1076 = vmatprep.subr.bf16.mxu0 0
        %1077 = vmatpush1.bf16.msra.mxu0 %v900
        %1078 = vmatprep.subr.bf16.mxu0 0
        %1079 = vmatpush1.bf16.msra.mxu0 %v899
        %1080 = vmatprep.subr.bf16.mxu0 0
        %1081 = vmatpush1.bf16.msra.mxu0 %v898
        %1082 = vmatprep.subr.bf16.mxu0 0
        %1083 = vmatpush1.bf16.msra.mxu0 %v897
        %1084 = vmatprep.subr.bf16.mxu0 0
        %1085 = vmatpush1.bf16.msra.mxu0 %v896
        %1086 = vmatprep.subr.bf16.mxu0 0
        %1087 = vmatpush1.bf16.msra.mxu0 %v895
        %1088 = vmatprep.subr.bf16.mxu0 0
        %1089 = vmatpush2.bf16.msra.mxu0 %v910
        %1090 = vmatprep.subr.bf16.mxu0 0
        %1091 = vmatpush2.bf16.msra.mxu0 %v909
        %1092 = vmatprep.subr.bf16.mxu0 0
        %1093 = vmatpush2.bf16.msra.mxu0 %v908
        %1094 = vmatprep.subr.bf16.mxu0 0
        %1095 = vmatpush2.bf16.msra.mxu0 %v907
        %1096 = vmatprep.subr.bf16.mxu0 0
        %1097 = vmatpush2.bf16.msra.mxu0 %v906
        %1098 = vmatprep.subr.bf16.mxu0 0
        %1099 = vmatpush2.bf16.msra.mxu0 %v905
        %1100 = vmatprep.subr.bf16.mxu0 0
        %1101 = vmatpush2.bf16.msra.mxu0 %v904
        %1102 = vmatprep.subr.bf16.mxu0 0
        %1103 = vmatpush2.bf16.msra.mxu0 %v903
        %1104 = vmatprep.mubr.bf16.mxu0 %v594
        %1105 = vmatmul.mubr.bf16.gmra.mxu0 %v593
        %v1106 = vpop.f32.mrf.mxu0
        %v1107 = vadd.f32 %v1010, %v1106
        %v1108 = vpop.f32.mrf.mxu0
        %v1109 = vpop.f32.mrf.mxu0
        %v1110 = vadd.f32 %v1013, %v1109
        %v1111 = vpop.f32.mrf.mxu0
        %1112 = vmatprep.mubr.bf16.mxu0 %v600
        %1113 = vmatmul.mubr.bf16.gmra.mxu0 %v599
        %v1114 = vpop.f32.mrf.mxu0
        %v1115 = vadd.f32 %v1018, %v1114
        %v1116 = vpop.f32.mrf.mxu0
        %v1117 = vpop.f32.mrf.mxu0
        %v1118 = vadd.f32 %v1021, %v1117
        %v1119 = vpop.f32.mrf.mxu0
        %1120 = vmatprep.mubr.bf16.mxu0 %v606
        %1121 = vmatmul.mubr.bf16.gmra.mxu0 %v605
        %v1122 = vpop.f32.mrf.mxu0
        %v1123 = vadd.f32 %v1026, %v1122
        %v1124 = vpop.f32.mrf.mxu0
        %v1125 = vpop.f32.mrf.mxu0
        %v1126 = vadd.f32 %v1029, %v1125
        %v1127 = vpop.f32.mrf.mxu0
        %1128 = vmatprep.mubr.bf16.mxu0 %v612
        %1129 = vmatmul.mubr.bf16.gmra.mxu0 %v611
        %v1130 = vpop.f32.mrf.mxu0
        %v1131 = vadd.f32 %v1034, %v1130
        %v1132 = vpop.f32.mrf.mxu0
        %v1133 = vpop.f32.mrf.mxu0
        %v1134 = vadd.f32 %v1037, %v1133
        %v1135 = vpop.f32.mrf.mxu0
        %1136 = vmatprep.mubr.bf16.mxu0 %v618
        %1137 = vmatmul.mubr.bf16.gmra.mxu0 %v617
        %v1138 = vpop.f32.mrf.mxu0
        %v1139 = vadd.f32 %v1042, %v1138
        %v1140 = vpop.f32.mrf.mxu0
        %v1141 = vpop.f32.mrf.mxu0
        %v1142 = vadd.f32 %v1045, %v1141
        %v1143 = vpop.f32.mrf.mxu0
        %1144 = vmatprep.mubr.bf16.mxu0 %v624
        %1145 = vmatmul.mubr.bf16.gmra.mxu0 %v623
        %v1146 = vpop.f32.mrf.mxu0
        %v1147 = vadd.f32 %v1050, %v1146
        %v1148 = vpop.f32.mrf.mxu0
        %v1149 = vpop.f32.mrf.mxu0
        %v1150 = vadd.f32 %v1053, %v1149
        %v1151 = vpop.f32.mrf.mxu0
        %1152 = vmatprep.mubr.bf16.mxu0 %v630
        %1153 = vmatmul.mubr.bf16.gmra.mxu0 %v629
        %v1154 = vpop.f32.mrf.mxu0
        %v1155 = vadd.f32 %v1058, %v1154
        %v1156 = vpop.f32.mrf.mxu0
        %v1157 = vpop.f32.mrf.mxu0
        %v1158 = vadd.f32 %v1061, %v1157
        %v1159 = vpop.f32.mrf.mxu0
        %1160 = vmatprep.mubr.bf16.mxu0 %v636
        %1161 = vmatmul.mubr.bf16.gmra.mxu0 %v635
        %v1162 = vpop.f32.mrf.mxu0
        %v1163 = vadd.f32 %v1066, %v1162
        %v1164 = vpop.f32.mrf.mxu0
        %v1165 = vpop.f32.mrf.mxu0
        %v1166 = vadd.f32 %v1069, %v1165
        %v1167 = vpop.f32.mrf.mxu0
        %1168 = vdwg.mxu0
        %1169 = vmatprep.subr.bf16.mxu0 0
        %1170 = vmatpush1.bf16.msra.mxu0 %v918
        %1171 = vmatprep.subr.bf16.mxu0 0
        %1172 = vmatpush1.bf16.msra.mxu0 %v917
        %1173 = vmatprep.subr.bf16.mxu0 0
        %1174 = vmatpush1.bf16.msra.mxu0 %v916
        %1175 = vmatprep.subr.bf16.mxu0 0
        %1176 = vmatpush1.bf16.msra.mxu0 %v915
        %1177 = vmatprep.subr.bf16.mxu0 0
        %1178 = vmatpush1.bf16.msra.mxu0 %v914
        %1179 = vmatprep.subr.bf16.mxu0 0
        %1180 = vmatpush1.bf16.msra.mxu0 %v913
        %1181 = vmatprep.subr.bf16.mxu0 0
        %1182 = vmatpush1.bf16.msra.mxu0 %v912
        %1183 = vmatprep.subr.bf16.mxu0 0
        %1184 = vmatpush1.bf16.msra.mxu0 %v911
        %1185 = vmatprep.subr.bf16.mxu0 0
        %1186 = vmatpush2.bf16.msra.mxu0 %v926
        %1187 = vmatprep.subr.bf16.mxu0 0
        %1188 = vmatpush2.bf16.msra.mxu0 %v925
        %1189 = vmatprep.subr.bf16.mxu0 0
        %1190 = vmatpush2.bf16.msra.mxu0 %v924
        %1191 = vmatprep.subr.bf16.mxu0 0
        %1192 = vmatpush2.bf16.msra.mxu0 %v923
        %1193 = vmatprep.subr.bf16.mxu0 0
        %1194 = vmatpush2.bf16.msra.mxu0 %v922
        %1195 = vmatprep.subr.bf16.mxu0 0
        %1196 = vmatpush2.bf16.msra.mxu0 %v921
        %1197 = vmatprep.subr.bf16.mxu0 0
        %1198 = vmatpush2.bf16.msra.mxu0 %v920
        %1199 = vmatprep.subr.bf16.mxu0 0
        %1200 = vmatpush2.bf16.msra.mxu0 %v919
        %1201 = vmatprep.mubr.bf16.mxu0 %v596
        %1202 = vmatmul.mubr.bf16.gmra.mxu0 %v595
        %v1203 = vpop.f32.mrf.mxu0
        %v1204 = vadd.f32 %v1107, %v1203
        %v1205 = vpop.f32.mrf.mxu0
        %v1206 = vpop.f32.mrf.mxu0
        %v1207 = vadd.f32 %v1110, %v1206
        %v1208 = vpop.f32.mrf.mxu0
        %1209 = vmatprep.mubr.bf16.mxu0 %v602
        %1210 = vmatmul.mubr.bf16.gmra.mxu0 %v601
        %v1211 = vpop.f32.mrf.mxu0
        %v1212 = vadd.f32 %v1115, %v1211
        %v1213 = vpop.f32.mrf.mxu0
        %v1214 = vpop.f32.mrf.mxu0
        %v1215 = vadd.f32 %v1118, %v1214
        %v1216 = vpop.f32.mrf.mxu0
        %1217 = vmatprep.mubr.bf16.mxu0 %v608
        %1218 = vmatmul.mubr.bf16.gmra.mxu0 %v607
        %v1219 = vpop.f32.mrf.mxu0
        %v1220 = vadd.f32 %v1123, %v1219
        %v1221 = vpop.f32.mrf.mxu0
        %v1222 = vpop.f32.mrf.mxu0
        %v1223 = vadd.f32 %v1126, %v1222
        %v1224 = vpop.f32.mrf.mxu0
        %1225 = vmatprep.mubr.bf16.mxu0 %v614
        %1226 = vmatmul.mubr.bf16.gmra.mxu0 %v613
        %v1227 = vpop.f32.mrf.mxu0
        %v1228 = vadd.f32 %v1131, %v1227
        %v1229 = vpop.f32.mrf.mxu0
        %v1230 = vpop.f32.mrf.mxu0
        %v1231 = vadd.f32 %v1134, %v1230
        %v1232 = vpop.f32.mrf.mxu0
        %1233 = vmatprep.mubr.bf16.mxu0 %v620
        %1234 = vmatmul.mubr.bf16.gmra.mxu0 %v619
        %v1235 = vpop.f32.mrf.mxu0
        %v1236 = vadd.f32 %v1139, %v1235
        %v1237 = vpop.f32.mrf.mxu0
        %v1238 = vpop.f32.mrf.mxu0
        %v1239 = vadd.f32 %v1142, %v1238
        %v1240 = vpop.f32.mrf.mxu0
        %1241 = vmatprep.mubr.bf16.mxu0 %v626
        %1242 = vmatmul.mubr.bf16.gmra.mxu0 %v625
        %v1243 = vpop.f32.mrf.mxu0
        %v1244 = vadd.f32 %v1147, %v1243
        %v1245 = vpop.f32.mrf.mxu0
        %v1246 = vpop.f32.mrf.mxu0
        %v1247 = vadd.f32 %v1150, %v1246
        %v1248 = vpop.f32.mrf.mxu0
        %1249 = vmatprep.mubr.bf16.mxu0 %v632
        %1250 = vmatmul.mubr.bf16.gmra.mxu0 %v631
        %v1251 = vpop.f32.mrf.mxu0
        %v1252 = vadd.f32 %v1155, %v1251
        %v1253 = vpop.f32.mrf.mxu0
        %v1254 = vpop.f32.mrf.mxu0
        %v1255 = vadd.f32 %v1158, %v1254
        %v1256 = vpop.f32.mrf.mxu0
        %1257 = vmatprep.mubr.bf16.mxu0 %v638
        %1258 = vmatmul.mubr.bf16.gmra.mxu0 %v637
        %v1259 = vpop.f32.mrf.mxu0
        %v1260 = vadd.f32 %v1163, %v1259
        %v1261 = vpop.f32.mrf.mxu0
        %v1262 = vpop.f32.mrf.mxu0
        %v1263 = vadd.f32 %v1166, %v1262
        %v1264 = vpop.f32.mrf.mxu0
        %1265 = vdwg.mxu0
        %v1266 = vmul.f32 %v1204, %v1204
        %v1267 = vmul.f32 %v1207, %v1207
        %v1268 = vmul.f32 %v1212, %v1212
        %v1269 = vmul.f32 %v1215, %v1215
        %v1270 = vmul.f32 %v1220, %v1220
        %v1271 = vmul.f32 %v1223, %v1223
        %v1272 = vmul.f32 %v1228, %v1228
        %v1273 = vmul.f32 %v1231, %v1231
        %v1274 = vmul.f32 %v1236, %v1236
        %v1275 = vmul.f32 %v1239, %v1239
        %v1276 = vmul.f32 %v1244, %v1244
        %v1277 = vmul.f32 %v1247, %v1247
        %v1278 = vmul.f32 %v1252, %v1252
        %v1279 = vmul.f32 %v1255, %v1255
        %v1280 = vmul.f32 %v1260, %v1260
        %v1281 = vmul.f32 %v1263, %v1263
        %v1282 = vmul.f32 %v1204, %v1266
        %v1283 = vmul.f32 %v1207, %v1267
        %v1284 = vmul.f32 %v1212, %v1268
        %v1285 = vmul.f32 %v1215, %v1269
        %v1286 = vmul.f32 %v1220, %v1270
        %v1287 = vmul.f32 %v1223, %v1271
        %v1288 = vmul.f32 %v1228, %v1272
        %v1289 = vmul.f32 %v1231, %v1273
        %v1290 = vmul.f32 %v1236, %v1274
        %v1291 = vmul.f32 %v1239, %v1275
        %v1292 = vmul.f32 %v1244, %v1276
        %v1293 = vmul.f32 %v1247, %v1277
        %v1294 = vmul.f32 %v1252, %v1278
        %v1295 = vmul.f32 %v1255, %v1279
        %v1296 = vmul.f32 %v1260, %v1280
        %v1297 = vmul.f32 %v1263, %v1281
        %v1298 = vmul.f32 %v1282, 0.044715
        %v1299 = vmul.f32 %v1283, 0.044715
        %v1300 = vmul.f32 %v1284, 0.044715
        %v1301 = vmul.f32 %v1285, 0.044715
        %v1302 = vmul.f32 %v1286, 0.044715
        %v1303 = vmul.f32 %v1287, 0.044715
        %v1304 = vmul.f32 %v1288, 0.044715
        %v1305 = vmul.f32 %v1289, 0.044715
        %v1306 = vmul.f32 %v1290, 0.044715
        %v1307 = vmul.f32 %v1291, 0.044715
        %v1308 = vmul.f32 %v1292, 0.044715
        %v1309 = vmul.f32 %v1293, 0.044715
        %v1310 = vmul.f32 %v1294, 0.044715
        %v1311 = vmul.f32 %v1295, 0.044715
        %v1312 = vmul.f32 %v1296, 0.044715
        %v1313 = vmul.f32 %v1297, 0.044715
        %v1314 = vadd.f32 %v1204, %v1298
        %v1315 = vadd.f32 %v1207, %v1299
        %v1316 = vadd.f32 %v1212, %v1300
        %v1317 = vadd.f32 %v1215, %v1301
        %v1318 = vadd.f32 %v1220, %v1302
        %v1319 = vadd.f32 %v1223, %v1303
        %v1320 = vadd.f32 %v1228, %v1304
        %v1321 = vadd.f32 %v1231, %v1305
        %v1322 = vadd.f32 %v1236, %v1306
        %v1323 = vadd.f32 %v1239, %v1307
        %v1324 = vadd.f32 %v1244, %v1308
        %v1325 = vadd.f32 %v1247, %v1309
        %v1326 = vadd.f32 %v1252, %v1310
        %v1327 = vadd.f32 %v1255, %v1311
        %v1328 = vadd.f32 %v1260, %v1312
        %v1329 = vadd.f32 %v1263, %v1313
        %v1330 = vmul.f32 %v1314, 0.7978846
        %v1331 = vmul.f32 %v1315, 0.7978846
        %v1332 = vmul.f32 %v1316, 0.7978846
        %v1333 = vmul.f32 %v1317, 0.7978846
        %v1334 = vmul.f32 %v1318, 0.7978846
        %v1335 = vmul.f32 %v1319, 0.7978846
        %v1336 = vmul.f32 %v1320, 0.7978846
        %v1337 = vmul.f32 %v1321, 0.7978846
        %v1338 = vmul.f32 %v1322, 0.7978846
        %v1339 = vmul.f32 %v1323, 0.7978846
        %v1340 = vmul.f32 %v1324, 0.7978846
        %v1341 = vmul.f32 %v1325, 0.7978846
        %v1342 = vmul.f32 %v1326, 0.7978846
        %v1343 = vmul.f32 %v1327, 0.7978846
        %v1344 = vmul.f32 %v1328, 0.7978846
        %v1345 = vmul.f32 %v1329, 0.7978846
        %v1346 = vtanh.pop %v1330
        %v1347 = vtanh.pop %v1331
        %v1348 = vtanh.pop %v1332
        %v1349 = vtanh.pop %v1333
        %v1350 = vtanh.pop %v1334
        %v1351 = vtanh.pop %v1335
        %v1352 = vtanh.pop %v1336
        %v1353 = vtanh.pop %v1337
        %v1354 = vtanh.pop %v1338
        %v1355 = vtanh.pop %v1339
        %v1356 = vtanh.pop %v1340
        %v1357 = vtanh.pop %v1341
        %v1358 = vtanh.pop %v1342
        %v1359 = vtanh.pop %v1343
        %v1360 = vtanh.pop %v1344
        %v1361 = vtanh.pop %v1345
        %v1362 = vadd.f32 %v1346, 1.0
        %v1363 = vadd.f32 %v1347, 1.0
        %v1364 = vadd.f32 %v1348, 1.0
        %v1365 = vadd.f32 %v1349, 1.0
        %v1366 = vadd.f32 %v1350, 1.0
        %v1367 = vadd.f32 %v1351, 1.0
        %v1368 = vadd.f32 %v1352, 1.0
        %v1369 = vadd.f32 %v1353, 1.0
        %v1370 = vadd.f32 %v1354, 1.0
        %v1371 = vadd.f32 %v1355, 1.0
        %v1372 = vadd.f32 %v1356, 1.0
        %v1373 = vadd.f32 %v1357, 1.0
        %v1374 = vadd.f32 %v1358, 1.0
        %v1375 = vadd.f32 %v1359, 1.0
        %v1376 = vadd.f32 %v1360, 1.0
        %v1377 = vadd.f32 %v1361, 1.0
        %v1378 = vmul.f32 %v1362, 0.5
        %v1379 = vmul.f32 %v1363, 0.5
        %v1380 = vmul.f32 %v1364, 0.5
        %v1381 = vmul.f32 %v1365, 0.5
        %v1382 = vmul.f32 %v1366, 0.5
        %v1383 = vmul.f32 %v1367, 0.5
        %v1384 = vmul.f32 %v1368, 0.5
        %v1385 = vmul.f32 %v1369, 0.5
        %v1386 = vmul.f32 %v1370, 0.5
        %v1387 = vmul.f32 %v1371, 0.5
        %v1388 = vmul.f32 %v1372, 0.5
        %v1389 = vmul.f32 %v1373, 0.5
        %v1390 = vmul.f32 %v1374, 0.5
        %v1391 = vmul.f32 %v1375, 0.5
        %v1392 = vmul.f32 %v1376, 0.5
        %v1393 = vmul.f32 %v1377, 0.5
        %v1394 = vmul.f32 %v1204, %v1378
        %v1395 = vmul.f32 %v1207, %v1379
        %v1396 = vmul.f32 %v1212, %v1380
        %v1397 = vmul.f32 %v1215, %v1381
        %v1398 = vmul.f32 %v1220, %v1382
        %v1399 = vmul.f32 %v1223, %v1383
        %v1400 = vmul.f32 %v1228, %v1384
        %v1401 = vmul.f32 %v1231, %v1385
        %v1402 = vmul.f32 %v1236, %v1386
        %v1403 = vmul.f32 %v1239, %v1387
        %v1404 = vmul.f32 %v1244, %v1388
        %v1405 = vmul.f32 %v1247, %v1389
        %v1406 = vmul.f32 %v1252, %v1390
        %v1407 = vmul.f32 %v1255, %v1391
        %v1408 = vmul.f32 %v1260, %v1392
        %v1409 = vmul.f32 %v1263, %v1393
        %v1410 = vpack.c.bf16 %v1395, %v1394
        %v1411 = vpack.c.bf16 %v1397, %v1396
        %v1412 = vpack.c.bf16 %v1399, %v1398
        %v1413 = vpack.c.bf16 %v1401, %v1400
        %v1414 = vpack.c.bf16 %v1403, %v1402
        %v1415 = vpack.c.bf16 %v1405, %v1404
        %v1416 = vpack.c.bf16 %v1407, %v1406
        %v1417 = vpack.c.bf16 %v1409, %v1408
        %v1418 = vld [vmem:[#allocation8] sm:$0xf]
        %v1419 = vld [vmem:[#allocation8 + $0x4] sm:$0xf]
        %v1420 = vld [vmem:[#allocation8 + $0x8] sm:$0xf]
        %v1421 = vld [vmem:[#allocation8 + $0xc] sm:$0xf]
        %v1422 = vld [vmem:[#allocation8 + $0x10] sm:$0xf]
        %v1423 = vld [vmem:[#allocation8 + $0x14] sm:$0xf]
        %v1424 = vld [vmem:[#allocation8 + $0x18] sm:$0xf]
        %v1425 = vld [vmem:[#allocation8 + $0x1c] sm:$0xf]
        %v1426 = vld [vmem:[#allocation8 + $0x20] sm:$0xf]
        %v1427 = vld [vmem:[#allocation8 + $0x24] sm:$0xf]
        %v1428 = vld [vmem:[#allocation8 + $0x28] sm:$0xf]
        %v1429 = vld [vmem:[#allocation8 + $0x2c] sm:$0xf]
        %v1430 = vld [vmem:[#allocation8 + $0x30] sm:$0xf]
        %v1431 = vld [vmem:[#allocation8 + $0x34] sm:$0xf]
        %v1432 = vld [vmem:[#allocation8 + $0x38] sm:$0xf]
        %v1433 = vld [vmem:[#allocation8 + $0x3c] sm:$0xf]
        %v1434 = vld [vmem:[%s4] sm:$0x1]
        %v1436 = vlaneseq
        %v1437 = vshrl.u32 %v1436, 7
        %v1438 = vsub.s32 0, %v1437
        %v1439 = vrot.slane %v1434, %v1438
        %v1457 = vunpack.c.l.b16 %v1418
        %v1458 = vunpack.c.l.b16 %v1419
        %v1459 = vunpack.c.l.b16 %v1420
        %v1460 = vunpack.c.l.b16 %v1421
        %v1461 = vunpack.c.l.b16 %v1422
        %v1462 = vunpack.c.l.b16 %v1423
        %v1463 = vunpack.c.l.b16 %v1424
        %v1464 = vunpack.c.l.b16 %v1425
        %v1465 = vunpack.c.l.b16 %v1426
        %v1466 = vunpack.c.l.b16 %v1427
        %v1467 = vunpack.c.l.b16 %v1428
        %v1468 = vunpack.c.l.b16 %v1429
        %v1469 = vunpack.c.l.b16 %v1430
        %v1470 = vunpack.c.l.b16 %v1431
        %v1471 = vunpack.c.l.b16 %v1432
        %v1472 = vunpack.c.l.b16 %v1433
        %v1473 = vpack.c.b16 %v1458, %v1457
        %v1474 = vpack.c.b16 %v1460, %v1459
        %v1475 = vpack.c.b16 %v1462, %v1461
        %v1476 = vpack.c.b16 %v1464, %v1463
        %v1477 = vpack.c.b16 %v1466, %v1465
        %v1478 = vpack.c.b16 %v1468, %v1467
        %v1479 = vpack.c.b16 %v1470, %v1469
        %v1480 = vpack.c.b16 %v1472, %v1471
        %1489 = vmatprep.subr.bf16.mxu0 0
        %1490 = vmatpush1.bf16.msra.mxu0 %v1480
        %1491 = vmatprep.subr.bf16.mxu0 0
        %1492 = vmatpush1.bf16.msra.mxu0 %v1479
        %1493 = vmatprep.subr.bf16.mxu0 0
        %1494 = vmatpush1.bf16.msra.mxu0 %v1478
        %1495 = vmatprep.subr.bf16.mxu0 0
        %1496 = vmatpush1.bf16.msra.mxu0 %v1477
        %1497 = vmatprep.subr.bf16.mxu0 0
        %1498 = vmatpush1.bf16.msra.mxu0 %v1476
        %1499 = vmatprep.subr.bf16.mxu0 0
        %1500 = vmatpush1.bf16.msra.mxu0 %v1475
        %1501 = vmatprep.subr.bf16.mxu0 0
        %1502 = vmatpush1.bf16.msra.mxu0 %v1474
        %1503 = vmatprep.subr.bf16.mxu0 0
        %1504 = vmatpush1.bf16.msra.mxu0 %v1473
        %1505 = vmatprep.subr.bf16.mxu0 0
        %1506 = vmatpush2.bf16.msra.mxu0 0
        %1507 = vmatprep.subr.bf16.mxu0 0
        %1508 = vmatpush2.bf16.msra.mxu0 0
        %1509 = vmatprep.subr.bf16.mxu0 0
        %1510 = vmatpush2.bf16.msra.mxu0 0
        %1511 = vmatprep.subr.bf16.mxu0 0
        %1512 = vmatpush2.bf16.msra.mxu0 0
        %1513 = vmatprep.subr.bf16.mxu0 0
        %1514 = vmatpush2.bf16.msra.mxu0 0
        %1515 = vmatprep.subr.bf16.mxu0 0
        %1516 = vmatpush2.bf16.msra.mxu0 0
        %1517 = vmatprep.subr.bf16.mxu0 0
        %1518 = vmatpush2.bf16.msra.mxu0 0
        %1519 = vmatprep.subr.bf16.mxu0 0
        %1520 = vmatpush2.bf16.msra.mxu0 0
        %1521 = vmatprep.mubr.bf16.mxu0 0
        %1522 = vmatmul.mubr.bf16.gmra.mxu0 %v1410
        %v1523 = vpop.f32.mrf.mxu0
        %v1524 = vadd.f32 %v1439, %v1523
        %v1525 = vpop.f32.mrf.mxu0
        %v1526 = vpop.f32.mrf.mxu0
        %v1527 = vadd.f32 %v1439, %v1526
        %v1528 = vpop.f32.mrf.mxu0
        %1529 = vmatprep.mubr.bf16.mxu0 0
        %1530 = vmatmul.mubr.bf16.gmra.mxu0 %v1411
        %v1531 = vpop.f32.mrf.mxu0
        %v1532 = vadd.f32 %v1439, %v1531
        %v1533 = vpop.f32.mrf.mxu0
        %v1534 = vpop.f32.mrf.mxu0
        %v1535 = vadd.f32 %v1439, %v1534
        %v1536 = vpop.f32.mrf.mxu0
        %1537 = vmatprep.mubr.bf16.mxu0 0
        %1538 = vmatmul.mubr.bf16.gmra.mxu0 %v1412
        %v1539 = vpop.f32.mrf.mxu0
        %v1540 = vadd.f32 %v1439, %v1539
        %v1541 = vpop.f32.mrf.mxu0
        %v1542 = vpop.f32.mrf.mxu0
        %v1543 = vadd.f32 %v1439, %v1542
        %v1544 = vpop.f32.mrf.mxu0
        %1545 = vmatprep.mubr.bf16.mxu0 0
        %1546 = vmatmul.mubr.bf16.gmra.mxu0 %v1413
        %v1547 = vpop.f32.mrf.mxu0
        %v1548 = vadd.f32 %v1439, %v1547
        %v1549 = vpop.f32.mrf.mxu0
        %v1550 = vpop.f32.mrf.mxu0
        %v1551 = vadd.f32 %v1439, %v1550
        %v1552 = vpop.f32.mrf.mxu0
        %1553 = vmatprep.mubr.bf16.mxu0 0
        %1554 = vmatmul.mubr.bf16.gmra.mxu0 %v1414
        %v1555 = vpop.f32.mrf.mxu0
        %v1556 = vadd.f32 %v1439, %v1555
        %v1557 = vpop.f32.mrf.mxu0
        %v1558 = vpop.f32.mrf.mxu0
        %v1559 = vadd.f32 %v1439, %v1558
        %v1560 = vpop.f32.mrf.mxu0
        %1561 = vmatprep.mubr.bf16.mxu0 0
        %1562 = vmatmul.mubr.bf16.gmra.mxu0 %v1415
        %v1563 = vpop.f32.mrf.mxu0
        %v1564 = vadd.f32 %v1439, %v1563
        %v1565 = vpop.f32.mrf.mxu0
        %v1566 = vpop.f32.mrf.mxu0
        %v1567 = vadd.f32 %v1439, %v1566
        %v1568 = vpop.f32.mrf.mxu0
        %1569 = vmatprep.mubr.bf16.mxu0 0
        %1570 = vmatmul.mubr.bf16.gmra.mxu0 %v1416
        %v1571 = vpop.f32.mrf.mxu0
        %v1572 = vadd.f32 %v1439, %v1571
        %v1573 = vpop.f32.mrf.mxu0
        %v1574 = vpop.f32.mrf.mxu0
        %v1575 = vadd.f32 %v1439, %v1574
        %v1576 = vpop.f32.mrf.mxu0
        %1577 = vmatprep.mubr.bf16.mxu0 0
        %1578 = vmatmul.mubr.bf16.gmra.mxu0 %v1417
        %v1579 = vpop.f32.mrf.mxu0
        %v1580 = vadd.f32 %v1439, %v1579
        %v1581 = vpop.f32.mrf.mxu0
        %v1582 = vpop.f32.mrf.mxu0
        %v1583 = vadd.f32 %v1439, %v1582
        %v1584 = vpop.f32.mrf.mxu0
        %1585 = vdwg.mxu0
        %v1586 = vld [vmem:[#allocation2] sm:$0xff]
        %v1587 = vld [vmem:[#allocation2 + $0x8] sm:$0xff]
        %v1588 = vmax.f32 %v1524, %v1540
        %v1589 = vmax.f32 %v1532, %v1548
        %v1590 = vmax.f32 %v1588, %v1556
        %v1591 = vmax.f32 %v1589, %v1564
        %v1592 = vmax.f32 %v1590, %v1572
        %v1593 = vmax.f32 %v1591, %v1580
        %v1594 = vmax.f32 %v1592, %v1593
        %v1595 = vmax.f32 %v1527, %v1543
        %v1596 = vmax.f32 %v1535, %v1551
        %v1597 = vmax.f32 %v1595, %v1559
        %v1598 = vmax.f32 %v1596, %v1567
        %v1599 = vmax.f32 %v1597, %v1575
        %v1600 = vmax.f32 %v1598, %v1583
        %v1601 = vmax.f32 %v1599, %v1600
        %v1602 = vmax.f32 %v1586, %v1594
        %v1603 = vmax.f32 %v1587, %v1601
        %1604 = vst [vmem:[#allocation2] sm:$0xff] %v1602
        %1605 = vst [vmem:[#allocation2 + $0x8] sm:$0xff] %v1603
        %p1606 = scmp.eq.s32.totalorder %s28, 1
        // Predicated region
        $region57: #{tpu_custom_call.1} parent=39 // pred_check
          %p1607 = pneg %p1606
        $region58: #{tpu_custom_call.1} parent=39 // pred_check_branch
          %1609 = sbr.rel (%p1607) target = $region60
        $region59: #{tpu_custom_call.1} parent=39 // pred_region
          %v1610 = vld [vmem:[#allocation2] sm:$0xff]
          %v1611 = vld [vmem:[#allocation2 + $0x8] sm:$0xff]
          %v1612 = vadd.f32 %v1610, %v1611
          %v1613 = vrot.slane %v1612, 4
          %v1614 = vadd.f32 %v1612, %v1613
          %v1615 = vrot.slane %v1614, 2
          %v1616 = vadd.f32 %v1614, %v1615
          %v1617 = vrot.slane %v1616, 1
          %v1618 = vadd.f32 %v1616, %v1617
          %v1619 = vrcp.pop 16.0
          %v1620 = vmul.f32 %v1618, %v1619
          %1621 = vst [vmem:[%s287] sm:$0x1] %v1620
        $region60: #{tpu_custom_call.1} parent=39 // pred_fallthru
          _
        %s1622 = sand.u32 %s155, 1
        %s1623 = scalar_lea.sflag [#allocation5], %s1622
        %s1624 = sand.u32 %s155, 1
        %s1625 = scalar_lea.vmem [#allocation9], %s1624
        // Predicated region
        $region61: #{tpu_custom_call.1} parent=39 // pred_check
          %p1626 = pneg %p165
        $region62: #{tpu_custom_call.1} parent=39 // pred_check_branch
          %1628 = sbr.rel (%p1626) target = $region64
        $region63: #{tpu_custom_call.1} parent=39 // pred_region
          %s1630 = ssub.s32 16, 16
          %1631 = vsyncadd %s1623, %s1630
          %s1632 = smul.addr %s27, 16
          %s1633 = scalar_lea.hbm %s5, %s1632
          %s1635 = sshll.u32 %s1625, 4
          %s1636 = int_to_ptr.vmem [resolvable:$true] %s1635
          %1638 = dma.vmem_to_hbm [thread:$0]  %s1636, 16, %s1633, %s1623
        $region64: #{tpu_custom_call.1} parent=39 // pred_fallthru
          _
      $region40: #{tpu_custom_call.1} parent=5 // pred_fallthru
        _
      %p1639 = scmp.le.s32.totalorder 2, %s18
      // Predicated region
      $region65: #{tpu_custom_call.1} parent=5 // pred_check
        %p1640 = pneg %p1639
      $region66: #{tpu_custom_call.1} parent=5 // pred_check_branch
        %1642 = sbr.rel (%p1640) target = $region68
      $region67: #{tpu_custom_call.1} parent=5 // pred_region
        %s1643 = ssub.s32 %s18, 2
        // Predicated region
        $region69: #{tpu_custom_call.1} parent=67 // pred_check
          %p1644 = pneg %p171
        $region70: #{tpu_custom_call.1} parent=67 // pred_check_branch
          %1646 = sbr.rel (%p1644) target = $region72
        $region71: #{tpu_custom_call.1} parent=67 // pred_region
          %s1647 = sand.u32 %s156, 1
          %s1648 = scalar_lea.sflag [#allocation5], %s1647
          %s1649 = sand.u32 %s156, 1
          %s1650 = scalar_lea.vmem [#allocation9], %s1649
          %1651 = dma.done %s1648, 16
        $region72: #{tpu_custom_call.1} parent=67 // pred_fallthru
          _
      $region68: #{tpu_custom_call.1} parent=5 // pred_fallthru
        _
    $region6: #{tpu_custom_call.1} parent=1 // loop_footer
      %s22 = sadd.s32 1, %s18
    $region7: #{tpu_custom_call.1} parent=1 // loop_footer_branch
      %17 = sbr.rel target = $region3
    $region8: #{tpu_custom_call.1} parent=1 // loop_exit
      _
    %1652 = vsyncpa [#allocation4], 1
    %s1653 = scalar_lea.sflag [#allocation4], 1
    %1654 = vsyncpa %s1653, 1
    %1655 = vsyncpa [#allocation7], 1
    %1656 = vsyncpa [#allocation5], 1
    %s1657 = scalar_lea.sflag [#allocation5], 1
    %1658 = vsyncpa %s1657, 1

</llo_original>
